<compile_context>
chip_gen: v5e
topology: v5e:2x2
jax: 0.10.0
libtpu: 0.0.40
codegen_flags: <defaults>
</compile_context>

<pallas_src>
import jax
import jax.numpy as jnp
from jax.experimental import pallas as pl
from jax.experimental.pallas import tpu as pltpu


def _round_up(n, m):
    return (n + m - 1) // m * m


def mlp_dd_kernel(x_ref, f_ref, p_ref,
                  w1a_ref, w1sc_ref, b1_ref,
                  w2_ref, b2_ref, w3_ref, b3_ref, w4_ref, b4_ref,
                  w5_ref, b5_ref, o_ref):
    """One batch tile of MLP_dd.

    x_ref   : (TN, AUG)    [xyz | t | extra feats]                    f32
    f_ref   : (4, 8*NF)    block-diag 2*pi*2^j pattern (sin|cos halves) f32
    p_ref   : (1, 8*NF)    phase row: [0]*4NF + [pi/2]*4NF             f32
    w1a_ref : (AUG, H)     W1 rows for [xyz | t | extras]              cdt
    w1sc_ref: (8*NF, H)    W1 rows for [sin block | cos block]         cdt
    w2..w4  : (H, H); w5_ref: (H, OUT)                                 cdt
    b*_ref  : (1, H) / (1, OUT)                                        f32
    o_ref   : (TN, OUT)                                                f32
    """
    cdt = w2_ref.dtype                    # MXU operand / activation dtype
    xa = x_ref[...]                       # f32

    def mm(a, w):                         # MXU matmul, f32 accumulation
        return jnp.dot(a.astype(cdt), w, preferred_element_type=jnp.float32)

    def swish(z):                         # Swish in compute dtype (bf16 on v6e/v7x)
        zc = z.astype(cdt)
        return zc * jax.nn.sigmoid(zc)

    # ---- layer 1: fourier features without the 57-wide concat ----
    # args[:, c*NF + j]        = x_c * 2*pi*2^j            (sin block)
    # args[:, 4NF + c*NF + j]  = x_c * 2*pi*2^j + pi/2     (cos block)
    # Built with 4 exact-f32 broadcast multiplies + adds; never rounded to bf16.
    F = f_ref[...]
    args = (xa[:, 0:1] * F[0:1] + xa[:, 1:2] * F[1:2]
            + xa[:, 2:3] * F[2:3] + xa[:, 3:4] * F[3:4] + p_ref[...])
    enc = jnp.sin(args)                                     # (TN, 8*NF) f32, EUP

    h = swish(mm(xa, w1a_ref[...]) + mm(enc, w1sc_ref[...]) + b1_ref[...])
    h = swish(mm(h, w2_ref[...]) + b2_ref[...])
    h = swish(mm(h, w3_ref[...]) + b3_ref[...])
    h = swish(mm(h, w4_ref[...]) + b4_ref[...])
    o_ref[...] = (mm(h, w5_ref[...]) + b5_ref[...]).astype(o_ref.dtype)


def mlp_dd_forward(x, t, params, *, num_frequencies=6, tile_n=1024,
                   compute_dtype=jnp.bfloat16):
    """MLP_dd forward.  x: (N, 3 + n_extra) f32, t: scalar or (N,).  Returns (N, out)."""
    (w1, b1), (w2, b2), (w3, b3), (w4, b4), (w5, b5) = params
    N, raw_dim = x.shape
    H = w2.shape[0]
    out_dim = w5.shape[1]
    nf = num_frequencies
    n_extra = raw_dim - 3
    assert w1.shape[0] == 4 + 8 * nf + n_extra, "W1 rows must equal fourier_dim"
    cdt = jnp.dtype(compute_dtype)

    # ---------- constants: block-diagonal frequency pattern + phase row ----------
    fw = (2.0 * jnp.pi * (2.0 ** jnp.linspace(0.0, nf - 1.0, nf))).astype(jnp.float32)
    blk = jnp.kron(jnp.eye(4, dtype=jnp.float32), fw[None, :])          # (4, 4*nf)
    f_mat = jnp.concatenate([blk, blk], axis=1)                         # (4, 8*nf)
    phase = jnp.concatenate([jnp.zeros((1, 4 * nf), jnp.float32),
                             jnp.full((1, 4 * nf), jnp.pi / 2.0, jnp.float32)],
                            axis=1)                                     # (1, 8*nf)

    # ---------- W1 row split: [xyz,t,extras] rows and stacked [sin|cos] rows ----------
    s1 = 4 + 8 * nf
    w1a = jnp.concatenate([w1[0:4], w1[s1:]], axis=0).astype(cdt)       # (raw_dim+1, H)
    w1sc = w1[4:s1].astype(cdt)                                         # (8*nf, H)
    b1r, b2r, b3r, b4r = (b.reshape(1, H).astype(jnp.float32)
                          for b in (b1, b2, b3, b4))
    w2c, w3c, w4c = (w.astype(cdt) for w in (w2, w3, w4))
    w5c = w5.astype(cdt)                                                # (H, out_dim)
    b5r = b5.reshape(1, out_dim).astype(jnp.float32)

    # ---------- fold t into x: x_aug = [xyz | t | extras] ----------
    t2d = jnp.broadcast_to(jnp.reshape(t, (-1, 1)).astype(jnp.float32), (N, 1))
    x_f = x.astype(jnp.float32)
    x_aug = jnp.concatenate([x_f[:, :3], t2d, x_f[:, 3:]], axis=1)      # (N, raw_dim+1)
    aug_dim = raw_dim + 1

    # ---------- batch tiling ----------
    align = 16 if cdt.itemsize < 4 else 8        # bf16 packs 2 rows per sublane
    n_al = _round_up(N, align)
    tile_n = max(align, min(_round_up(tile_n, align), n_al))
    half = _round_up((n_al + 1) // 2, align)
    if n_al >= 2 * align and tile_n > half:      # >= 2 grid steps -> both v7x TCs busy
        tile_n = half
    n_pad = _round_up(N, tile_n)
    if n_pad != N:
        x_aug = jnp.pad(x_aug, ((0, n_pad - N), (0, 0)))

    operands = (x_aug, f_mat, phase, w1a, w1sc, b1r,
                w2c, b2r, w3c, b3r, w4c, b4r, w5c, b5r)

    def resident(shape):          # full-array block, constant index -> stays in VMEM
        zeros = (0,) * len(shape)
        return pl.BlockSpec(shape, lambda i: zeros)

    in_specs = [
        pl.BlockSpec((tile_n, aug_dim), lambda i: (i, 0)),              # x_aug tile
        resident((4, 8 * nf)), resident((1, 8 * nf)),                   # freq pattern, phase
        resident((aug_dim, H)), resident((8 * nf, H)), resident((1, H)),
        resident((H, H)), resident((1, H)),                             # W2, b2
        resident((H, H)), resident((1, H)),                             # W3, b3
        resident((H, H)), resident((1, H)),                             # W4, b4
        resident((H, out_dim)), resident((1, out_dim)),                 # W5, b5
    ]
    out_specs = pl.BlockSpec((tile_n, out_dim), lambda i: (i, 0))

    # VMEM estimate: resident weights (double-buffered by default) + I/O tiles.
    resident_bytes = 2 * sum(int(a.size) * a.dtype.itemsize for a in operands[1:])
    tile_bytes = 2 * tile_n * (aug_dim + out_dim) * 4
    vmem_est = resident_bytes + tile_bytes + (1 << 20)
    vmem_limit = None if vmem_est <= (30 << 20) else min(vmem_est, 60 << 20)

    cost = pl.CostEstimate(
        flops=2 * n_pad * (aug_dim * H + 8 * nf * H + 3 * H * H + H * out_dim),
        transcendentals=n_pad * (8 * nf + 4 * H),
        bytes_accessed=sum(int(a.size) * a.dtype.itemsize for a in operands)
        + n_pad * out_dim * 4,
    )

    out = pl.pallas_call(
        mlp_dd_kernel,
        out_shape=jax.ShapeDtypeStruct((n_pad, out_dim), jnp.float32),
        grid=(n_pad // tile_n,),
        in_specs=in_specs,
        out_specs=out_specs,
        compiler_params=pltpu.CompilerParams(
            dimension_semantics=("parallel",),
            vmem_limit_bytes=vmem_limit),
        cost_estimate=cost,
    )(*operands)
    return out[:N]


def reference_forward(x, t, params, num_frequencies=6):
    """Pure-JAX mirror of the PyTorch MLP_dd.forward."""
    (w1, b1), (w2, b2), (w3, b3), (w4, b4), (w5, b5) = params
    N = x.shape[0]
    t2 = jnp.broadcast_to(jnp.reshape(t, (-1, 1)), (N, 1)).astype(jnp.float32)
    h0 = jnp.concatenate([x[:, :3], t2], axis=1)                        # (N, 4)
    scaled = 2.0 * jnp.pi * h0
    freqs = 2.0 ** jnp.linspace(0.0, num_frequencies - 1.0, num_frequencies)
    si = (scaled[..., None] * freqs).reshape(N, -1)                     # (N, 4*NF)
    enc = jnp.sin(jnp.concatenate([si, si + jnp.pi / 2.0], axis=-1))    # (N, 8*NF)
    h = jnp.concatenate([h0, enc, x[:, 3:]], axis=-1)                   # (N, 57)
    swish = lambda z: jax.nn.sigmoid(z) * z
    h = swish(h @ w1 + b1)
    h = swish(h @ w2 + b2)
    h = swish(h @ w3 + b3)
    h = swish(h @ w4 + b4)
    return h @ w5 + b5


if __name__ == "__main__":
    key = jax.random.PRNGKey(0)

    N = 8            # batch of points
    hidden = 256     # MLP_dd default hidden_size (multiple of 128 -> lane-dense)
    channels = 3     # MLP_dd default `channels` (output dim of final Linear)
    nf = 6
    fourier_dim = (3 + 1) * nf * 2 + (3 + 1) + 5   # = 57, as hard-coded in the module
    raw_dim = 3 + 5  # x carries [xyz | 5 extra features] so fourier_dim matches

    ks = jax.random.split(key, 12)

    def linear(kw, kb, din, dout):
        # (in, out)-layout weights == transposed nn.Linear weights
        return (jax.random.normal(kw, (din, dout), jnp.float32) * 0.02,
                jax.random.normal(kb, (dout,), jnp.float32) * 0.02)

    params = [
        linear(ks[0], ks[1], fourier_dim, hidden),
        linear(ks[2], ks[3], hidden, hidden),
        linear(ks[4], ks[5], hidden, hidden),
        linear(ks[6], ks[7], hidden, hidden),
        linear(ks[8], ks[9], hidden, channels),
    ]
    x = jax.random.uniform(ks[10], (N, raw_dim), jnp.float32)   # coords/features in [0,1]
    t = jax.random.uniform(ks[11], (), jnp.float32)             # scalar timestep

    ref = reference_forward(x, t, params, nf)

    # f32 MXU operands + f32 Swish: tight check against the pure-JAX reference.
    out_f32 = jax.block_until_ready(
        mlp_dd_forward(x, t, params, num_frequencies=nf, compute_dtype=jnp.float32))
    assert out_f32.shape == (N, channels)
    assert jnp.allclose(out_f32, ref, atol=2e-4, rtol=1e-3), \
        float(jnp.max(jnp.abs(out_f32 - ref)))

    # bf16 MXU operands + bf16 Swish (f32 accumulation, f32 fourier args): looser check.
    out_bf16 = jax.block_until_ready(
        mlp_dd_forward(x, t, params, num_frequencies=nf, compute_dtype=jnp.bfloat16))
    assert out_bf16.shape == (N, channels)
    assert jnp.allclose(out_bf16, ref, atol=8e-3, rtol=2e-2), \
        float(jnp.max(jnp.abs(out_bf16 - ref)))

    # Larger batch: exercises row padding and the multi-step (2 TC) grid path.
    N2 = 300
    x2 = jax.random.uniform(jax.random.PRNGKey(1), (N2, raw_dim), jnp.float32)
    t2 = jax.random.uniform(jax.random.PRNGKey(2), (), jnp.float32)
    ref2 = reference_forward(x2, t2, params, nf)
    out2 = jax.block_until_ready(
        mlp_dd_forward(x2, t2, params, num_frequencies=nf, compute_dtype=jnp.bfloat16))
    assert out2.shape == (N2, channels)
    assert jnp.allclose(out2, ref2, atol=8e-3, rtol=2e-2), \
        float(jnp.max(jnp.abs(out2 - ref2)))

    print("KERNEL_OK")
</pallas_src>

<mosaic_0001>
module attributes {stable_mosaic.version = 11 : i64} {
  func.func @mlp_dd_kernel(%arg0: i32, %arg1: memref<8x9xf32, #tpu.memory_space<vmem>>, %arg2: memref<4x48xf32, #tpu.memory_space<vmem>>, %arg3: memref<1x48xf32, #tpu.memory_space<vmem>>, %arg4: memref<9x256xf32, #tpu.memory_space<vmem>>, %arg5: memref<48x256xf32, #tpu.memory_space<vmem>>, %arg6: memref<1x256xf32, #tpu.memory_space<vmem>>, %arg7: memref<256x256xf32, #tpu.memory_space<vmem>>, %arg8: memref<1x256xf32, #tpu.memory_space<vmem>>, %arg9: memref<256x256xf32, #tpu.memory_space<vmem>>, %arg10: memref<1x256xf32, #tpu.memory_space<vmem>>, %arg11: memref<256x256xf32, #tpu.memory_space<vmem>>, %arg12: memref<1x256xf32, #tpu.memory_space<vmem>>, %arg13: memref<256x3xf32, #tpu.memory_space<vmem>>, %arg14: memref<1x3xf32, #tpu.memory_space<vmem>>, %arg15: memref<8x3xf32, #tpu.memory_space<vmem>>) attributes {dimension_semantics = [#tpu.dimension_semantics<parallel>], iteration_bounds = array<i64: 1>, scalar_prefetch = 0 : i64, scratch_operands = 0 : i64, tpu.core_type = #tpu.core_type<tc>, window_params = [{transform_indices = @transform_0, window_bounds = array<i64: 8, 9>}, {pipeline_mode = #tpu.pipeline_mode<synchronous>, transform_indices = @transform_1, window_bounds = array<i64: 4, 48>}, {pipeline_mode = #tpu.pipeline_mode<synchronous>, transform_indices = @transform_2, window_bounds = array<i64: 1, 48>}, {pipeline_mode = #tpu.pipeline_mode<synchronous>, transform_indices = @transform_3, window_bounds = array<i64: 9, 256>}, {pipeline_mode = #tpu.pipeline_mode<synchronous>, transform_indices = @transform_4, window_bounds = array<i64: 48, 256>}, {pipeline_mode = #tpu.pipeline_mode<synchronous>, transform_indices = @transform_5, window_bounds = array<i64: 1, 256>}, {pipeline_mode = #tpu.pipeline_mode<synchronous>, transform_indices = @transform_6, window_bounds = array<i64: 256, 256>}, {pipeline_mode = #tpu.pipeline_mode<synchronous>, transform_indices = @transform_7, window_bounds = array<i64: 1, 256>}, {pipeline_mode = #tpu.pipeline_mode<synchronous>, transform_indices = @transform_8, window_bounds = array<i64: 256, 256>}, {pipeline_mode = #tpu.pipeline_mode<synchronous>, transform_indices = @transform_9, window_bounds = array<i64: 1, 256>}, {pipeline_mode = #tpu.pipeline_mode<synchronous>, transform_indices = @transform_10, window_bounds = array<i64: 256, 256>}, {pipeline_mode = #tpu.pipeline_mode<synchronous>, transform_indices = @transform_11, window_bounds = array<i64: 1, 256>}, {pipeline_mode = #tpu.pipeline_mode<synchronous>, transform_indices = @transform_12, window_bounds = array<i64: 256, 3>}, {pipeline_mode = #tpu.pipeline_mode<synchronous>, transform_indices = @transform_13, window_bounds = array<i64: 1, 3>}, {transform_indices = @transform_14, window_bounds = array<i64: 8, 3>}]} {
    %c0 = arith.constant 0 : index
    %c0_0 = arith.constant 0 : index
    %0 = vector.load %arg1[%c0, %c0_0] : memref<8x9xf32, #tpu.memory_space<vmem>>, vector<8x9xf32>
    %c0_1 = arith.constant 0 : index
    %c0_2 = arith.constant 0 : index
    %1 = vector.load %arg2[%c0_1, %c0_2] : memref<4x48xf32, #tpu.memory_space<vmem>>, vector<4x48xf32>
    %2 = vector.extract_strided_slice %0 {offsets = [0, 0], sizes = [8, 1], strides = [1, 1]} : vector<8x9xf32> to vector<8x1xf32>
    %3 = vector.extract_strided_slice %1 {offsets = [0, 0], sizes = [1, 48], strides = [1, 1]} : vector<4x48xf32> to vector<1x48xf32>
    %4 = vector.broadcast %2 : vector<8x1xf32> to vector<8x48xf32>
    %5 = vector.broadcast %3 : vector<1x48xf32> to vector<8x48xf32>
    %6 = arith.mulf %4, %5 : vector<8x48xf32>
    %7 = vector.extract_strided_slice %0 {offsets = [0, 1], sizes = [8, 1], strides = [1, 1]} : vector<8x9xf32> to vector<8x1xf32>
    %8 = vector.extract_strided_slice %1 {offsets = [1, 0], sizes = [1, 48], strides = [1, 1]} : vector<4x48xf32> to vector<1x48xf32>
    %9 = vector.broadcast %7 : vector<8x1xf32> to vector<8x48xf32>
    %10 = vector.broadcast %8 : vector<1x48xf32> to vector<8x48xf32>
    %11 = arith.mulf %9, %10 : vector<8x48xf32>
    %12 = arith.addf %6, %11 : vector<8x48xf32>
    %13 = vector.extract_strided_slice %0 {offsets = [0, 2], sizes = [8, 1], strides = [1, 1]} : vector<8x9xf32> to vector<8x1xf32>
    %14 = vector.extract_strided_slice %1 {offsets = [2, 0], sizes = [1, 48], strides = [1, 1]} : vector<4x48xf32> to vector<1x48xf32>
    %15 = vector.broadcast %13 : vector<8x1xf32> to vector<8x48xf32>
    %16 = vector.broadcast %14 : vector<1x48xf32> to vector<8x48xf32>
    %17 = arith.mulf %15, %16 : vector<8x48xf32>
    %18 = arith.addf %12, %17 : vector<8x48xf32>
    %19 = vector.extract_strided_slice %0 {offsets = [0, 3], sizes = [8, 1], strides = [1, 1]} : vector<8x9xf32> to vector<8x1xf32>
    %20 = vector.extract_strided_slice %1 {offsets = [3, 0], sizes = [1, 48], strides = [1, 1]} : vector<4x48xf32> to vector<1x48xf32>
    %21 = vector.broadcast %19 : vector<8x1xf32> to vector<8x48xf32>
    %22 = vector.broadcast %20 : vector<1x48xf32> to vector<8x48xf32>
    %23 = arith.mulf %21, %22 : vector<8x48xf32>
    %24 = arith.addf %18, %23 : vector<8x48xf32>
    %c0_3 = arith.constant 0 : index
    %c0_4 = arith.constant 0 : index
    %25 = vector.load %arg3[%c0_3, %c0_4] : memref<1x48xf32, #tpu.memory_space<vmem>>, vector<1x48xf32>
    %26 = vector.broadcast %25 : vector<1x48xf32> to vector<8x48xf32>
    %27 = arith.addf %24, %26 : vector<8x48xf32>
    %28 = math.sin %27 : vector<8x48xf32>
    %c0_5 = arith.constant 0 : index
    %c0_6 = arith.constant 0 : index
    %29 = vector.load %arg4[%c0_5, %c0_6] : memref<9x256xf32, #tpu.memory_space<vmem>>, vector<9x256xf32>
    %cst = arith.constant dense<0.000000e+00> : vector<8x256xf32>
    %30 = tpu.matmul %0, %29, %cst {dimension_numbers = #tpu.dot_dimension_numbers<[1], [0], [0], [1], [0, 0, 1, 1], [], []>} : vector<8x9xf32>, vector<9x256xf32>, vector<8x256xf32> -> vector<8x256xf32>
    %c0_7 = arith.constant 0 : index
    %c0_8 = arith.constant 0 : index
    %31 = vector.load %arg5[%c0_7, %c0_8] : memref<48x256xf32, #tpu.memory_space<vmem>>, vector<48x256xf32>
    %cst_9 = arith.constant dense<0.000000e+00> : vector<8x256xf32>
    %32 = tpu.matmul %28, %31, %cst_9 {dimension_numbers = #tpu.dot_dimension_numbers<[1], [0], [0], [1], [0, 0, 1, 1], [], []>} : vector<8x48xf32>, vector<48x256xf32>, vector<8x256xf32> -> vector<8x256xf32>
    %33 = arith.addf %30, %32 : vector<8x256xf32>
    %c0_10 = arith.constant 0 : index
    %c0_11 = arith.constant 0 : index
    %34 = vector.load %arg6[%c0_10, %c0_11] : memref<1x256xf32, #tpu.memory_space<vmem>>, vector<1x256xf32>
    %35 = vector.broadcast %34 : vector<1x256xf32> to vector<8x256xf32>
    %36 = arith.addf %33, %35 : vector<8x256xf32>
    %37 = arith.negf %36 : vector<8x256xf32>
    %38 = math.exp %37 : vector<8x256xf32>
    %cst_12 = arith.constant 1.000000e+00 : f32
    %39 = vector.broadcast %cst_12 : f32 to vector<8x256xf32>
    %40 = arith.addf %39, %38 : vector<8x256xf32>
    %41 = arith.divf %39, %40 : vector<8x256xf32>
    %42 = arith.mulf %36, %41 : vector<8x256xf32>
    %c0_13 = arith.constant 0 : index
    %c0_14 = arith.constant 0 : index
    %43 = vector.load %arg7[%c0_13, %c0_14] : memref<256x256xf32, #tpu.memory_space<vmem>>, vector<256x256xf32>
    %cst_15 = arith.constant dense<0.000000e+00> : vector<8x256xf32>
    %44 = tpu.matmul %42, %43, %cst_15 {dimension_numbers = #tpu.dot_dimension_numbers<[1], [0], [0], [1], [0, 0, 1, 1], [], []>} : vector<8x256xf32>, vector<256x256xf32>, vector<8x256xf32> -> vector<8x256xf32>
    %c0_16 = arith.constant 0 : index
    %c0_17 = arith.constant 0 : index
    %45 = vector.load %arg8[%c0_16, %c0_17] : memref<1x256xf32, #tpu.memory_space<vmem>>, vector<1x256xf32>
    %46 = vector.broadcast %45 : vector<1x256xf32> to vector<8x256xf32>
    %47 = arith.addf %44, %46 : vector<8x256xf32>
    %48 = arith.negf %47 : vector<8x256xf32>
    %49 = math.exp %48 : vector<8x256xf32>
    %cst_18 = arith.constant 1.000000e+00 : f32
    %50 = vector.broadcast %cst_18 : f32 to vector<8x256xf32>
    %51 = arith.addf %50, %49 : vector<8x256xf32>
    %52 = arith.divf %50, %51 : vector<8x256xf32>
    %53 = arith.mulf %47, %52 : vector<8x256xf32>
    %c0_19 = arith.constant 0 : index
    %c0_20 = arith.constant 0 : index
    %54 = vector.load %arg9[%c0_19, %c0_20] : memref<256x256xf32, #tpu.memory_space<vmem>>, vector<256x256xf32>
    %cst_21 = arith.constant dense<0.000000e+00> : vector<8x256xf32>
    %55 = tpu.matmul %53, %54, %cst_21 {dimension_numbers = #tpu.dot_dimension_numbers<[1], [0], [0], [1], [0, 0, 1, 1], [], []>} : vector<8x256xf32>, vector<256x256xf32>, vector<8x256xf32> -> vector<8x256xf32>
    %c0_22 = arith.constant 0 : index
    %c0_23 = arith.constant 0 : index
    %56 = vector.load %arg10[%c0_22, %c0_23] : memref<1x256xf32, #tpu.memory_space<vmem>>, vector<1x256xf32>
    %57 = vector.broadcast %56 : vector<1x256xf32> to vector<8x256xf32>
    %58 = arith.addf %55, %57 : vector<8x256xf32>
    %59 = arith.negf %58 : vector<8x256xf32>
    %60 = math.exp %59 : vector<8x256xf32>
    %cst_24 = arith.constant 1.000000e+00 : f32
    %61 = vector.broadcast %cst_24 : f32 to vector<8x256xf32>
    %62 = arith.addf %61, %60 : vector<8x256xf32>
    %63 = arith.divf %61, %62 : vector<8x256xf32>
    %64 = arith.mulf %58, %63 : vector<8x256xf32>
    %c0_25 = arith.constant 0 : index
    %c0_26 = arith.constant 0 : index
    %65 = vector.load %arg11[%c0_25, %c0_26] : memref<256x256xf32, #tpu.memory_space<vmem>>, vector<256x256xf32>
    %cst_27 = arith.constant dense<0.000000e+00> : vector<8x256xf32>
    %66 = tpu.matmul %64, %65, %cst_27 {dimension_numbers = #tpu.dot_dimension_numbers<[1], [0], [0], [1], [0, 0, 1, 1], [], []>} : vector<8x256xf32>, vector<256x256xf32>, vector<8x256xf32> -> vector<8x256xf32>
    %c0_28 = arith.constant 0 : index
    %c0_29 = arith.constant 0 : index
    %67 = vector.load %arg12[%c0_28, %c0_29] : memref<1x256xf32, #tpu.memory_space<vmem>>, vector<1x256xf32>
    %68 = vector.broadcast %67 : vector<1x256xf32> to vector<8x256xf32>
    %69 = arith.addf %66, %68 : vector<8x256xf32>
    %70 = arith.negf %69 : vector<8x256xf32>
    %71 = math.exp %70 : vector<8x256xf32>
    %cst_30 = arith.constant 1.000000e+00 : f32
    %72 = vector.broadcast %cst_30 : f32 to vector<8x256xf32>
    %73 = arith.addf %72, %71 : vector<8x256xf32>
    %74 = arith.divf %72, %73 : vector<8x256xf32>
    %75 = arith.mulf %69, %74 : vector<8x256xf32>
    %c0_31 = arith.constant 0 : index
    %c0_32 = arith.constant 0 : index
    %76 = vector.load %arg13[%c0_31, %c0_32] : memref<256x3xf32, #tpu.memory_space<vmem>>, vector<256x3xf32>
    %cst_33 = arith.constant dense<0.000000e+00> : vector<8x3xf32>
    %77 = tpu.matmul %75, %76, %cst_33 {dimension_numbers = #tpu.dot_dimension_numbers<[1], [0], [0], [1], [0, 0, 1, 1], [], []>} : vector<8x256xf32>, vector<256x3xf32>, vector<8x3xf32> -> vector<8x3xf32>
    %c0_34 = arith.constant 0 : index
    %c0_35 = arith.constant 0 : index
    %78 = vector.load %arg14[%c0_34, %c0_35] : memref<1x3xf32, #tpu.memory_space<vmem>>, vector<1x3xf32>
    %79 = vector.broadcast %78 : vector<1x3xf32> to vector<8x3xf32>
    %80 = arith.addf %77, %79 : vector<8x3xf32>
    %c0_36 = arith.constant 0 : index
    %c0_37 = arith.constant 0 : index
    %81 = vector.load %arg15[%c0_36, %c0_37] : memref<8x3xf32, #tpu.memory_space<vmem>>, vector<8x3xf32>
    tpu.vector_store %arg15[%c0_36, %c0_37], %80 {strides = array<i32>} : memref<8x3xf32, #tpu.memory_space<vmem>>, vector<8x3xf32>,
    return
  }
  func.func @transform_0(%arg0: i32) -> (i32, i32) {
    %c0_i32 = arith.constant 0 : i32
    %c0_i32_0 = arith.constant 0 : i32
    return %arg0, %c0_i32 : i32, i32
  }
  func.func @transform_1(%arg0: i32) -> (i32, i32) {
    %c0_i32 = arith.constant 0 : i32
    %c0_i32_0 = arith.constant 0 : i32
    %c0_i32_1 = arith.constant 0 : i32
    return %c0_i32, %c0_i32_0 : i32, i32
  }
  func.func @transform_2(%arg0: i32) -> (i32, i32) {
    %c0_i32 = arith.constant 0 : i32
    %c0_i32_0 = arith.constant 0 : i32
    %c0_i32_1 = arith.constant 0 : i32
    return %c0_i32, %c0_i32_0 : i32, i32
  }
  func.func @transform_3(%arg0: i32) -> (i32, i32) {
    %c0_i32 = arith.constant 0 : i32
    %c0_i32_0 = arith.constant 0 : i32
    %c0_i32_1 = arith.constant 0 : i32
    return %c0_i32, %c0_i32_0 : i32, i32
  }
  func.func @transform_4(%arg0: i32) -> (i32, i32) {
    %c0_i32 = arith.constant 0 : i32
    %c0_i32_0 = arith.constant 0 : i32
    %c0_i32_1 = arith.constant 0 : i32
    return %c0_i32, %c0_i32_0 : i32, i32
  }
  func.func @transform_5(%arg0: i32) -> (i32, i32) {
    %c0_i32 = arith.constant 0 : i32
    %c0_i32_0 = arith.constant 0 : i32
    %c0_i32_1 = arith.constant 0 : i32
    return %c0_i32, %c0_i32_0 : i32, i32
  }
  func.func @transform_6(%arg0: i32) -> (i32, i32) {
    %c0_i32 = arith.constant 0 : i32
    %c0_i32_0 = arith.constant 0 : i32
    %c0_i32_1 = arith.constant 0 : i32
    return %c0_i32, %c0_i32_0 : i32, i32
  }
  func.func @transform_7(%arg0: i32) -> (i32, i32) {
    %c0_i32 = arith.constant 0 : i32
    %c0_i32_0 = arith.constant 0 : i32
    %c0_i32_1 = arith.constant 0 : i32
    return %c0_i32, %c0_i32_0 : i32, i32
  }
  func.func @transform_8(%arg0: i32) -> (i32, i32) {
    %c0_i32 = arith.constant 0 : i32
    %c0_i32_0 = arith.constant 0 : i32
    %c0_i32_1 = arith.constant 0 : i32
    return %c0_i32, %c0_i32_0 : i32, i32
  }
  func.func @transform_9(%arg0: i32) -> (i32, i32) {
    %c0_i32 = arith.constant 0 : i32
    %c0_i32_0 = arith.constant 0 : i32
    %c0_i32_1 = arith.constant 0 : i32
    return %c0_i32, %c0_i32_0 : i32, i32
  }
  func.func @transform_10(%arg0: i32) -> (i32, i32) {
    %c0_i32 = arith.constant 0 : i32
    %c0_i32_0 = arith.constant 0 : i32
    %c0_i32_1 = arith.constant 0 : i32
    return %c0_i32, %c0_i32_0 : i32, i32
  }
  func.func @transform_11(%arg0: i32) -> (i32, i32) {
    %c0_i32 = arith.constant 0 : i32
    %c0_i32_0 = arith.constant 0 : i32
    %c0_i32_1 = arith.constant 0 : i32
    return %c0_i32, %c0_i32_0 : i32, i32
  }
  func.func @transform_12(%arg0: i32) -> (i32, i32) {
    %c0_i32 = arith.constant 0 : i32
    %c0_i32_0 = arith.constant 0 : i32
    %c0_i32_1 = arith.constant 0 : i32
    return %c0_i32, %c0_i32_0 : i32, i32
  }
  func.func @transform_13(%arg0: i32) -> (i32, i32) {
    %c0_i32 = arith.constant 0 : i32
    %c0_i32_0 = arith.constant 0 : i32
    %c0_i32_1 = arith.constant 0 : i32
    return %c0_i32, %c0_i32_0 : i32, i32
  }
  func.func @transform_14(%arg0: i32) -> (i32, i32) {
    %c0_i32 = arith.constant 0 : i32
    %c0_i32_0 = arith.constant 0 : i32
    return %arg0, %c0_i32 : i32, i32
  }
}

</mosaic_0001>

<llo_original>
// kernel: tpu_custom_call.1
$region0: #{tpu_custom_call.1}
  #allocation0 [shape = 'u32[]', space=smem, size = 0x4, offset = 0x4, fixed_abs, tag = 'smem constant byte address 0x4 - core index']
  #allocation1 [shape = 'u32[72,128]{1,0:T(1,128)}', space=vmem, size = 0x9000, scoped, tag = 'internal scratch']
  %s0 = inlined_call_operand.vmem [shape: f32[8,9], index: 0, kind: input, shape index: {}]
  %s1 = inlined_call_operand.vmem [shape: f32[4,48], index: 1, kind: input, shape index: {}]
  %s2 = inlined_call_operand.vmem [shape: f32[1,48], index: 2, kind: input, shape index: {}]
  %s3 = inlined_call_operand.vmem [shape: f32[9,256], index: 3, kind: input, shape index: {}]
  %s4 = inlined_call_operand.vmem [shape: f32[48,256], index: 4, kind: input, shape index: {}]
  %s5 = inlined_call_operand.vmem [shape: f32[1,256], index: 5, kind: input, shape index: {}]
  %s6 = inlined_call_operand.hbm [shape: f32[256,256], index: 6, kind: input, shape index: {}]
  %s7 = inlined_call_operand.vmem [shape: f32[1,256], index: 7, kind: input, shape index: {}]
  %s8 = inlined_call_operand.hbm [shape: f32[256,256], index: 8, kind: input, shape index: {}]
  %s9 = inlined_call_operand.vmem [shape: f32[1,256], index: 9, kind: input, shape index: {}]
  %s10 = inlined_call_operand.hbm [shape: f32[256,256], index: 10, kind: input, shape index: {}]
  %s11 = inlined_call_operand.vmem [shape: f32[1,256], index: 11, kind: input, shape index: {}]
  %s12 = inlined_call_operand.vmem [shape: f32[256,3], index: 12, kind: input, shape index: {}]
  %s13 = inlined_call_operand.vmem [shape: f32[1,3], index: 13, kind: input, shape index: {}]
  %s14 = inlined_call_operand.vmem [shape: f32[8,3], index: 14, kind: output, shape index: {}]
  %s15 = sld [smem:[#allocation0]]
  $region78: #{tpu_custom_call.1} parent=0
    _
  %s17 = ssub.s32 1, %s15
  %s18 = scalar_select 0, %s17, %s15
  $region1: #{tpu_custom_call.1} parent=0
    #allocation2 [shape = 'u8[262144]{0}', space=vmem, size = 0x40000, scoped, tag = 'input window, operand 6, single buffered']
    #allocation3 [shape = 's32[1]{0}', space=sflag, size = 0x4, scoped, tag = 'scoped memory for tpu_custom_call.1']
    #allocation4 [shape = 'u8[262144]{0}', space=vmem, size = 0x40000, scoped, tag = 'input window, operand 8, single buffered']
    #allocation5 [shape = 's32[1]{0}', space=sflag, size = 0x4, scoped, tag = 'scoped memory for tpu_custom_call.1']
    #allocation6 [shape = 'u8[262144]{0}', space=vmem, size = 0x40000, scoped, tag = 'input window, operand 10, single buffered']
    %19 = vsyncpa [#allocation3], 0
    %20 = vsyncpa [#allocation5], 0
    // Predicated region
    $region2: #{tpu_custom_call.1} parent=1 // pred_check
      _
    $region3: #{tpu_custom_call.1} parent=1 // pred_check_branch
      %22 = sbr.rel (0) target = $region5
    $region4: #{tpu_custom_call.1} parent=1 // pred_region
      _
    $region5: #{tpu_custom_call.1} parent=1 // pred_fallthru
      _
    // Predicated region
    $region6: #{tpu_custom_call.1} parent=1 // pred_check
      _
    $region7: #{tpu_custom_call.1} parent=1 // pred_check_branch
      %24 = sbr.rel (0) target = $region9
    $region8: #{tpu_custom_call.1} parent=1 // pred_region
      _
    $region9: #{tpu_custom_call.1} parent=1 // pred_fallthru
      _
    // Predicated region
    $region10: #{tpu_custom_call.1} parent=1 // pred_check
      _
    $region11: #{tpu_custom_call.1} parent=1 // pred_check_branch
      %26 = sbr.rel (0) target = $region13
    $region12: #{tpu_custom_call.1} parent=1 // pred_region
      _
    $region13: #{tpu_custom_call.1} parent=1 // pred_fallthru
      _
    // Predicated region
    $region14: #{tpu_custom_call.1} parent=1 // pred_check
      _
    $region15: #{tpu_custom_call.1} parent=1 // pred_check_branch
      %28 = sbr.rel (0) target = $region17
    $region16: #{tpu_custom_call.1} parent=1 // pred_region
      _
    $region17: #{tpu_custom_call.1} parent=1 // pred_fallthru
      _
    // Predicated region
    $region18: #{tpu_custom_call.1} parent=1 // pred_check
      _
    $region19: #{tpu_custom_call.1} parent=1 // pred_check_branch
      %30 = sbr.rel (0) target = $region21
    $region20: #{tpu_custom_call.1} parent=1 // pred_region
      _
    $region21: #{tpu_custom_call.1} parent=1 // pred_fallthru
      _
    // Predicated region
    $region22: #{tpu_custom_call.1} parent=1 // pred_check
      _
    $region23: #{tpu_custom_call.1} parent=1 // pred_check_branch
      %32 = sbr.rel (0) target = $region25
    $region24: #{tpu_custom_call.1} parent=1 // pred_region
      _
    $region25: #{tpu_custom_call.1} parent=1 // pred_fallthru
      _
    // Predicated region
    $region26: #{tpu_custom_call.1} parent=1 // pred_check
      _
    $region27: #{tpu_custom_call.1} parent=1 // pred_check_branch
      %34 = sbr.rel (0) target = $region29
    $region28: #{tpu_custom_call.1} parent=1 // pred_region
      %36 = vsyncadd [#allocation3], 0
      %s37 = sshll.u32 %s6, 4
      %s38 = int_to_ptr.hbm [resolvable:$true] %s37
      %s39 = sshll.u32 [#allocation2], 4
      %s40 = int_to_ptr.vmem [resolvable:$true] %s39
      %45 = dma.hbm_to_vmem [thread:$0]  %s38, 8192, %s40, [#allocation3], 256, 256, 16
    $region29: #{tpu_custom_call.1} parent=1 // pred_fallthru
      _
    // Predicated region
    $region30: #{tpu_custom_call.1} parent=1 // pred_check
      _
    $region31: #{tpu_custom_call.1} parent=1 // pred_check_branch
      %47 = sbr.rel (0) target = $region33
    $region32: #{tpu_custom_call.1} parent=1 // pred_region
      _
    $region33: #{tpu_custom_call.1} parent=1 // pred_fallthru
      _
    // Predicated region
    $region34: #{tpu_custom_call.1} parent=1 // pred_check
      _
    $region35: #{tpu_custom_call.1} parent=1 // pred_check_branch
      %49 = sbr.rel (0) target = $region37
    $region36: #{tpu_custom_call.1} parent=1 // pred_region
      %51 = vsyncadd [#allocation5], 0
      %s52 = sshll.u32 %s8, 4
      %s53 = int_to_ptr.hbm [resolvable:$true] %s52
      %s54 = sshll.u32 [#allocation4], 4
      %s55 = int_to_ptr.vmem [resolvable:$true] %s54
      %60 = dma.hbm_to_vmem [thread:$0]  %s53, 8192, %s55, [#allocation5], 256, 256, 16
    $region37: #{tpu_custom_call.1} parent=1 // pred_fallthru
      _
    // Predicated region
    $region38: #{tpu_custom_call.1} parent=1 // pred_check
      _
    $region39: #{tpu_custom_call.1} parent=1 // pred_check_branch
      %62 = sbr.rel (0) target = $region41
    $region40: #{tpu_custom_call.1} parent=1 // pred_region
      _
    $region41: #{tpu_custom_call.1} parent=1 // pred_fallthru
      _
    // Predicated region
    $region42: #{tpu_custom_call.1} parent=1 // pred_check
      _
    $region43: #{tpu_custom_call.1} parent=1 // pred_check_branch
      %64 = sbr.rel (0) target = $region45
    $region44: #{tpu_custom_call.1} parent=1 // pred_region
      %66 = vsyncadd [#allocation5], 0
      %s67 = sshll.u32 %s10, 4
      %s68 = int_to_ptr.hbm [resolvable:$true] %s67
      %s69 = sshll.u32 [#allocation6], 4
      %s70 = int_to_ptr.vmem [resolvable:$true] %s69
      %75 = dma.hbm_to_vmem [thread:$0]  %s68, 8192, %s70, [#allocation5], 256, 256, 16
    $region45: #{tpu_custom_call.1} parent=1 // pred_fallthru
      _
    // Predicated region
    $region46: #{tpu_custom_call.1} parent=1 // pred_check
      _
    $region47: #{tpu_custom_call.1} parent=1 // pred_check_branch
      %77 = sbr.rel (0) target = $region49
    $region48: #{tpu_custom_call.1} parent=1 // pred_region
      _
    $region49: #{tpu_custom_call.1} parent=1 // pred_fallthru
      _
    // Predicated region
    $region50: #{tpu_custom_call.1} parent=1 // pred_check
      _
    $region51: #{tpu_custom_call.1} parent=1 // pred_check_branch
      %79 = sbr.rel (0) target = $region53
    $region52: #{tpu_custom_call.1} parent=1 // pred_region
      _
    $region53: #{tpu_custom_call.1} parent=1 // pred_fallthru
      _
    // Predicated region
    $region54: #{tpu_custom_call.1} parent=1 // pred_check
      _
    $region55: #{tpu_custom_call.1} parent=1 // pred_check_branch
      %81 = sbr.rel (0) target = $region57
    $region56: #{tpu_custom_call.1} parent=1 // pred_region
      _
    $region57: #{tpu_custom_call.1} parent=1 // pred_fallthru
      _
    // Predicated region
    $region58: #{tpu_custom_call.1} parent=1 // pred_check
      _
    $region59: #{tpu_custom_call.1} parent=1 // pred_check_branch
      %83 = sbr.rel (0) target = $region61
    $region60: #{tpu_custom_call.1} parent=1 // pred_region
      %85 = dma.done [#allocation3], 8192
    $region61: #{tpu_custom_call.1} parent=1 // pred_fallthru
      _
    // Predicated region
    $region62: #{tpu_custom_call.1} parent=1 // pred_check
      _
    $region63: #{tpu_custom_call.1} parent=1 // pred_check_branch
      %87 = sbr.rel (0) target = $region65
    $region64: #{tpu_custom_call.1} parent=1 // pred_region
      %89 = dma.done [#allocation5], 8192
    $region65: #{tpu_custom_call.1} parent=1 // pred_fallthru
      _
    // Predicated region
    $region66: #{tpu_custom_call.1} parent=1 // pred_check
      _
    $region67: #{tpu_custom_call.1} parent=1 // pred_check_branch
      %91 = sbr.rel (0) target = $region69
    $region68: #{tpu_custom_call.1} parent=1 // pred_region
      %93 = dma.done [#allocation5], 8192
    $region69: #{tpu_custom_call.1} parent=1 // pred_fallthru
      _
    %v94 = vld [vmem:[%s0] sm:$0xff]
    %v95 = vld [vmem:[%s1] sm:$0xf]
    %97 = vset.pattern.permute.xlu0 0
    %98 = vperm.xlu0 %97, %v94
    %v99 = vpop.permute.xlu0 %98
    %v101 = vperm.slane %v95, 0
    %v102 = vmul.f32 %v99, %v101
    %103 = vset.pattern.permute.xlu0 1
    %104 = vperm.xlu0 %103, %v94
    %v105 = vpop.permute.xlu0 %104
    %v107 = vperm.slane %v95, 1
    %v108 = vmul.f32 %v105, %v107
    %v109 = vadd.f32 %v102, %v108
    %110 = vset.pattern.permute.xlu0 2
    %111 = vperm.xlu0 %110, %v94
    %v112 = vpop.permute.xlu0 %111
    %v114 = vperm.slane %v95, 2
    %v115 = vmul.f32 %v112, %v114
    %v116 = vadd.f32 %v109, %v115
    %117 = vset.pattern.permute.xlu0 3
    %118 = vperm.xlu0 %117, %v94
    %v119 = vpop.permute.xlu0 %118
    %v121 = vperm.slane %v95, 3
    %v122 = vmul.f32 %v119, %v121
    %v123 = vadd.f32 %v116, %v122
    %v124 = vld [vmem:[%s2] sm:$0x1]
    %v126 = vperm.slane %v124, 0
    %v128 = vadd.f32 %v123, %v126
    %v129 = vand.u32 2147483647, %v128
    %vm130 = vcmp.le.f32.partialorder %v129, 0.7853982
    %vm131 = vcmp.lt.s32.totalorder %v128, 0
    %v132 = vand.u32 %v128, 2139095040
    %v133 = vshrl.u32 %v132, 23
    %v134 = vsub.s32 %v133, 127
    %v135 = vand.u32 2147483647, %v128
    %v136 = vand.u32 %v135, 8388607
    %v137 = vor.u32 %v136, 8388608
    %v138 = vsub.s32 0, %v137
    %v139 = vadd.s32 %v134, 1
    %vm140 = vcmp.gt.s32.totalorder %v139, 0
    %v141 = vsel %vm140, %v139, 0
    %v142 = vshrl.u32 %v141, 5
    %v143 = vand.u32 %v141, 31
    %v144 = vsub.s32 32, %v143
    %v145 = vshrl.u32 683565275, %v144
    %v146 = vshll.u32 683565275, %v143
    %v147 = vshrl.u32 2475754826, %v144
    %v148 = vor.u32 %v146, %v147
    %v149 = vshll.u32 2475754826, %v143
    %v150 = vshrl.u32 2131351028, %v144
    %v151 = vor.u32 %v149, %v150
    %v152 = vshll.u32 2131351028, %v143
    %v153 = vshrl.u32 2102212464, %v144
    %v154 = vor.u32 %v152, %v153
    %v155 = vshll.u32 2102212464, %v143
    %v156 = vshrl.u32 920167782, %v144
    %v157 = vor.u32 %v155, %v156
    %v158 = vshll.u32 920167782, %v143
    %v159 = vshrl.u32 1326507024, %v144
    %v160 = vor.u32 %v158, %v159
    %vm161 = vcmp.lt.s32.totalorder %v142, 1
    %vm162 = vcmp.lt.s32.totalorder %v142, 2
    %vm163 = vcmp.lt.s32.totalorder %v142, 3
    %vm164 = vcmp.lt.s32.totalorder %v142, 4
    %v165 = vsel %vm161, %v145, %v148
    %v166 = vsel %vm164, %v154, 2102212464
    %v167 = vsel %vm163, %v151, %v166
    %v168 = vsel %vm162, %v165, %v167
    %v169 = vsel %vm161, %v148, %v151
    %v170 = vsel %vm164, %v157, 920167782
    %v171 = vsel %vm163, %v154, %v170
    %v172 = vsel %vm162, %v169, %v171
    %v173 = vsel %vm161, %v151, %v154
    %v174 = vsel %vm164, %v160, 1326507024
    %v175 = vsel %vm163, %v157, %v174
    %v176 = vsel %vm162, %v173, %v175
    %v177 = vshll.u32 %v137, 8
    %v178 = vand.u32 %v177, 65535
    %v179 = vshrl.u32 %v177, 16
    %v180 = vand.u32 %v176, 65535
    %v181 = vshrl.u32 %v176, 16
    %v182 = vmul.u32 %v178, %v180
    %v183 = vmul.u32 %v178, %v181
    %v184 = vmul.u32 %v179, %v180
    %v185 = vmul.u32 %v179, %v181
    %v186 = vshll.u32 %v183, 16
    %v187 = vshrl.u32 %v183, 16
    %v188 = vshll.u32 %v184, 16
    %v189 = vshrl.u32 %v184, 16
    %vm190 = vc.u32 %v182, %v186
    %v191 = vsel %vm190, 1, 0
    %v192 = vadd.s32 %v182, %v186
    %v193 = vadd.s32 %v185, %v191
    %vm194 = vc.u32 %v192, %v188
    %v195 = vsel %vm194, 1, 0
    %v196 = vadd.s32 %v192, %v188
    %v197 = vadd.s32 %v193, %v195
    %v198 = vadd.s32 %v197, %v187
    %v199 = vadd.s32 %v198, %v189
    %v200 = vand.u32 %v177, 65535
    %v201 = vshrl.u32 %v177, 16
    %v202 = vand.u32 %v172, 65535
    %v203 = vshrl.u32 %v172, 16
    %v204 = vmul.u32 %v200, %v202
    %v205 = vmul.u32 %v200, %v203
    %v206 = vmul.u32 %v201, %v202
    %v207 = vmul.u32 %v201, %v203
    %v208 = vshll.u32 %v205, 16
    %v209 = vshrl.u32 %v205, 16
    %v210 = vshll.u32 %v206, 16
    %v211 = vshrl.u32 %v206, 16
    %vm212 = vc.u32 %v204, %v208
    %v213 = vsel %vm212, 1, 0
    %v214 = vadd.s32 %v204, %v208
    %v215 = vadd.s32 %v207, %v213
    %vm216 = vc.u32 %v214, %v210
    %v217 = vsel %vm216, 1, 0
    %v218 = vadd.s32 %v214, %v210
    %v219 = vadd.s32 %v215, %v217
    %v220 = vadd.s32 %v219, %v209
    %v221 = vadd.s32 %v220, %v211
    %v222 = vmul.u32 %v177, %v168
    %v223 = vadd.s32 %v199, %v218
    %vm224 = vc.u32 %v199, %v218
    %v225 = vadd.s32 %v221, 1
    %v226 = vsel %vm224, %v225, %v221
    %v227 = vadd.s32 %v222, %v226
    %v228 = vadd.s32 %v227, 536870912
    %v229 = vshrl.u32 %v228, 30
    %v230 = vshll.u32 %v229, 30
    %v231 = vsub.s32 %v227, %v230
    %vm232 = vcmp.lt.s32.totalorder %v231, 0
    %v233 = vsub.s32 0, %v231
    %v234 = vsel %vm232, %v233, %v231
    %v235 = vclz %v234
    %v236 = vsub.s32 %v235, 2
    %vm237 = vcmp.gt.s32.totalorder 0, %v236
    %v238 = vsel %vm237, 0, %v236
    %v239 = vsub.s32 32, %v238
    %v240 = vshll.u32 %v231, %v238
    %v241 = vshrl.u32 %v223, %v239
    %v242 = vor.u32 %v240, %v241
    %v243 = vsub.s32 4294967266, %v238
    %v244 = vadd.s32 %v243, 127
    %v245 = vshll.u32 %v244, 23
    %v246 = vor.u32 4788187, %v245
    %v247 = vand.u32 2147483647, %v246
    %v249 = vcvt.s32.f32 %v242
    %v250 = vmul.f32 %v249, %v247
    %v251 = vxor.u32 %v250, 2147483648
    %v252 = vsel %vm131, %v251, %v250
    %v253 = vsub.s32 4, %v229
    %v254 = vsel %vm131, %v253, %v229
    %v255 = vsel %vm130, %v128, %v252
    %v256 = vsel %vm130, 0, %v254
    %v257 = vmul.f32 %v255, %v255
    %v258 = vmul.f32 %v257, -0.001358992
    %v259 = vadd.f32 %v258, 0.041655596
    %v260 = vmul.f32 %v257, %v259
    %v261 = vadd.f32 %v260, -0.4999988
    %v262 = vmul.f32 %v257, %v261
    %v263 = vadd.f32 1.0, %v262
    %v264 = vmul.f32 %v255, %v255
    %v265 = vmul.f32 %v264, -0.00019511016
    %v266 = vadd.f32 %v265, 0.008332121
    %v267 = vmul.f32 %v264, %v266
    %v268 = vadd.f32 %v267, -0.16666654
    %v269 = vmul.f32 %v264, %v268
    %v270 = vadd.f32 %v269, 1.0
    %v271 = vmul.f32 %v270, %v255
    %vm272 = vweird.f32 %v128
    %v273 = vadd.s32 %v256, 3
    %v274 = vand.u32 %v273, 3
    %vm275 = vcmp.lt.s32.totalorder %v274, 2
    %vm276 = vcmp.eq.s32.totalorder %v274, 0
    %v277 = vxor.u32 %v271, 2147483648
    %v278 = vsel %vm276, %v263, %v277
    %vm279 = vcmp.eq.s32.totalorder %v274, 2
    %v280 = vxor.u32 %v263, 2147483648
    %v281 = vsel %vm279, %v280, %v271
    %v282 = vsel %vm275, %v278, %v281
    %v283 = vsel %vm272, nan, %v282
    %v284 = vld [vmem:[%s3] sm:$0xff]
    %v285 = vld [vmem:[%s3 + $0x8] sm:$0xff]
    %v286 = vld [vmem:[%s3 + $0x10] sm:$0x1]
    %v287 = vld [vmem:[%s3 + $0x18] sm:$0x1]
    %v288 = vld [vmem:[%s4] sm:$0xff]
    %v289 = vld [vmem:[%s4 + $0x8] sm:$0xff]
    %v290 = vld [vmem:[%s4 + $0x10] sm:$0xff]
    %v291 = vld [vmem:[%s4 + $0x18] sm:$0xff]
    %v292 = vld [vmem:[%s4 + $0x20] sm:$0xff]
    %v293 = vld [vmem:[%s4 + $0x28] sm:$0xff]
    %v294 = vld [vmem:[%s4 + $0x30] sm:$0xff]
    %v295 = vld [vmem:[%s4 + $0x38] sm:$0xff]
    %v296 = vld [vmem:[%s4 + $0x40] sm:$0xff]
    %v297 = vld [vmem:[%s4 + $0x48] sm:$0xff]
    %v298 = vld [vmem:[%s4 + $0x50] sm:$0xff]
    %v299 = vld [vmem:[%s4 + $0x58] sm:$0xff]
    %vm300 = vcmask 392192
    %v302 = vsel %vm300, %v283, 0
    %304 = vmatpush.msra.mxu0 0.0
    %305 = vmatpush.msra.mxu0 0.0
    %306 = vmatpush.msra.mxu0 0.0
    %307 = vmatpush.msra.mxu0 0.0
    %308 = vmatpush.msra.mxu0 0.0
    %309 = vmatpush.msra.mxu0 0.0
    %310 = vmatpush.msra.mxu0 0.0
    %311 = vmatpush.msra.mxu0 0.0
    %312 = vmatpush.msra.mxu0 0.0
    %313 = vmatpush.msra.mxu0 0.0
    %314 = vmatpush.msra.mxu0 %v298
    %315 = vmatpush.msra.mxu0 %v296
    %316 = vmatpush.msra.mxu0 %v294
    %317 = vmatpush.msra.mxu0 %v292
    %318 = vmatpush.msra.mxu0 %v290
    %319 = vmatpush.msra.mxu0 %v288
    %320 = vmatmul.f32.gmra.mxu0 %v302
    %v321 = vpop.f32.mrf.mxu0
    %v322 = vadd.f32 0.0, %v321
    %323 = vdwg.mxu0
    %324 = vmatpush.msra.mxu0 0.0
    %325 = vmatpush.msra.mxu0 0.0
    %326 = vmatpush.msra.mxu0 0.0
    %327 = vmatpush.msra.mxu0 0.0
    %328 = vmatpush.msra.mxu0 0.0
    %329 = vmatpush.msra.mxu0 0.0
    %330 = vmatpush.msra.mxu0 0.0
    %331 = vmatpush.msra.mxu0 0.0
    %332 = vmatpush.msra.mxu0 0.0
    %333 = vmatpush.msra.mxu0 0.0
    %334 = vmatpush.msra.mxu0 %v299
    %335 = vmatpush.msra.mxu0 %v297
    %336 = vmatpush.msra.mxu0 %v295
    %337 = vmatpush.msra.mxu0 %v293
    %338 = vmatpush.msra.mxu0 %v291
    %339 = vmatpush.msra.mxu0 %v289
    %340 = vmatmul.f32.gmra.mxu0 %v302
    %v341 = vpop.f32.mrf.mxu0
    %v342 = vadd.f32 0.0, %v341
    %343 = vdwg.mxu0
    %vm344 = vcmask 72704
    %v345 = vsel %vm344, %v94, 0
    %vm347 = vcmask 1040384
    %v349 = vsel %vm347, %v286, 0
    %v352 = vsel %vm347, %v287, 0
    %354 = vmatpush.msra.mxu0 0.0
    %355 = vmatpush.msra.mxu0 0.0
    %356 = vmatpush.msra.mxu0 0.0
    %357 = vmatpush.msra.mxu0 0.0
    %358 = vmatpush.msra.mxu0 0.0
    %359 = vmatpush.msra.mxu0 0.0
    %360 = vmatpush.msra.mxu0 0.0
    %361 = vmatpush.msra.mxu0 0.0
    %362 = vmatpush.msra.mxu0 0.0
    %363 = vmatpush.msra.mxu0 0.0
    %364 = vmatpush.msra.mxu0 0.0
    %365 = vmatpush.msra.mxu0 0.0
    %366 = vmatpush.msra.mxu0 0.0
    %367 = vmatpush.msra.mxu0 0.0
    %368 = vmatpush.msra.mxu0 %v349
    %369 = vmatpush.msra.mxu0 %v284
    %370 = vmatmul.f32.gmra.mxu0 %v345
    %v371 = vpop.f32.mrf.mxu0
    %v372 = vadd.f32 %v322, %v371
    %373 = vdwg.mxu0
    %374 = vmatpush.msra.mxu0 0.0
    %375 = vmatpush.msra.mxu0 0.0
    %376 = vmatpush.msra.mxu0 0.0
    %377 = vmatpush.msra.mxu0 0.0
    %378 = vmatpush.msra.mxu0 0.0
    %379 = vmatpush.msra.mxu0 0.0
    %380 = vmatpush.msra.mxu0 0.0
    %381 = vmatpush.msra.mxu0 0.0
    %382 = vmatpush.msra.mxu0 0.0
    %383 = vmatpush.msra.mxu0 0.0
    %384 = vmatpush.msra.mxu0 0.0
    %385 = vmatpush.msra.mxu0 0.0
    %386 = vmatpush.msra.mxu0 0.0
    %387 = vmatpush.msra.mxu0 0.0
    %388 = vmatpush.msra.mxu0 %v352
    %389 = vmatpush.msra.mxu0 %v285
    %390 = vmatmul.f32.gmra.mxu0 %v345
    %v391 = vpop.f32.mrf.mxu0
    %v392 = vadd.f32 %v342, %v391
    %393 = vdwg.mxu0
    %v394 = vld [vmem:[%s5] sm:$0x3]
    %v396 = vperm.slane %v394, 0
    %v397 = vperm.slane %v394, 1
    %v400 = vadd.f32 %v372, %v396
    %v401 = vadd.f32 %v392, %v397
    %v402 = vxor.u32 %v400, 2147483648
    %v403 = vxor.u32 %v401, 2147483648
    %v404 = vmul.f32 %v402, 1.442695
    %v405 = vpow.pop %v404
    %v406 = vmul.f32 %v403, 1.442695
    %v407 = vpow.pop %v406
    %v408 = vadd.f32 %v405, 1.0
    %v409 = vadd.f32 %v407, 1.0
    %v410 = vrcp.pop %v408
    %v411 = vmul.f32 %v408, %v410
    %v412 = vsub.f32 1.0, %v411
    %v413 = vmul.f32 %v410, %v412
    %v414 = vadd.f32 %v410, %v413
    %vm415 = vweird.f32 %v408
    %vm416 = vweird.f32 %v410
    %vm417 = vmor %vm415, %vm416
    %v418 = vsel %vm417, %v410, %v414
    %v419 = vand.u32 2147483647, %v408
    %vm420 = vcmp.eq.f32.partialorder %v419, 8.507059e+37
    %v421 = vand.u32 %v408, 2147483648
    %v422 = vor.u32 1.1754944e-38, %v421
    %v423 = vsel %vm420, %v422, %v418
    %v424 = vmul.f32 1.0, %v423
    %v425 = vrcp.pop %v409
    %v426 = vmul.f32 %v409, %v425
    %v427 = vsub.f32 1.0, %v426
    %v428 = vmul.f32 %v425, %v427
    %v429 = vadd.f32 %v425, %v428
    %vm430 = vweird.f32 %v409
    %vm431 = vweird.f32 %v425
    %vm432 = vmor %vm430, %vm431
    %v433 = vsel %vm432, %v425, %v429
    %v434 = vand.u32 2147483647, %v409
    %vm435 = vcmp.eq.f32.partialorder %v434, 8.507059e+37
    %v436 = vand.u32 %v409, 2147483648
    %v437 = vor.u32 1.1754944e-38, %v436
    %v438 = vsel %vm435, %v437, %v433
    %v439 = vmul.f32 1.0, %v438
    %v440 = vmul.f32 %v400, %v424
    %v441 = vmul.f32 %v401, %v439
    %v442 = vld [vmem:[#allocation2] sm:$0xff]
    %v443 = vld [vmem:[#allocation2 + $0x8] sm:$0xff]
    %v444 = vld [vmem:[#allocation2 + $0x10] sm:$0xff]
    %v445 = vld [vmem:[#allocation2 + $0x18] sm:$0xff]
    %v446 = vld [vmem:[#allocation2 + $0x20] sm:$0xff]
    %v447 = vld [vmem:[#allocation2 + $0x28] sm:$0xff]
    %v448 = vld [vmem:[#allocation2 + $0x30] sm:$0xff]
    %v449 = vld [vmem:[#allocation2 + $0x38] sm:$0xff]
    %v450 = vld [vmem:[#allocation2 + $0x40] sm:$0xff]
    %v451 = vld [vmem:[#allocation2 + $0x48] sm:$0xff]
    %v452 = vld [vmem:[#allocation2 + $0x50] sm:$0xff]
    %v453 = vld [vmem:[#allocation2 + $0x58] sm:$0xff]
    %v454 = vld [vmem:[#allocation2 + $0x60] sm:$0xff]
    %v455 = vld [vmem:[#allocation2 + $0x68] sm:$0xff]
    %v456 = vld [vmem:[#allocation2 + $0x70] sm:$0xff]
    %v457 = vld [vmem:[#allocation2 + $0x78] sm:$0xff]
    %v458 = vld [vmem:[#allocation2 + $0x80] sm:$0xff]
    %v459 = vld [vmem:[#allocation2 + $0x88] sm:$0xff]
    %v460 = vld [vmem:[#allocation2 + $0x90] sm:$0xff]
    %v461 = vld [vmem:[#allocation2 + $0x98] sm:$0xff]
    %v462 = vld [vmem:[#allocation2 + $0xa0] sm:$0xff]
    %v463 = vld [vmem:[#allocation2 + $0xa8] sm:$0xff]
    %v464 = vld [vmem:[#allocation2 + $0xb0] sm:$0xff]
    %v465 = vld [vmem:[#allocation2 + $0xb8] sm:$0xff]
    %v466 = vld [vmem:[#allocation2 + $0xc0] sm:$0xff]
    %v467 = vld [vmem:[#allocation2 + $0xc8] sm:$0xff]
    %v468 = vld [vmem:[#allocation2 + $0xd0] sm:$0xff]
    %v469 = vld [vmem:[#allocation2 + $0xd8] sm:$0xff]
    %v470 = vld [vmem:[#allocation2 + $0xe0] sm:$0xff]
    %v471 = vld [vmem:[#allocation2 + $0xe8] sm:$0xff]
    %v472 = vld [vmem:[#allocation2 + $0xf0] sm:$0xff]
    %v473 = vld [vmem:[#allocation2 + $0xf8] sm:$0xff]
    %v474 = vld [vmem:[#allocation2 + $0x100] sm:$0xff]
    %v475 = vld [vmem:[#allocation2 + $0x108] sm:$0xff]
    %v476 = vld [vmem:[#allocation2 + $0x110] sm:$0xff]
    %v477 = vld [vmem:[#allocation2 + $0x118] sm:$0xff]
    %v478 = vld [vmem:[#allocation2 + $0x120] sm:$0xff]
    %v479 = vld [vmem:[#allocation2 + $0x128] sm:$0xff]
    %v480 = vld [vmem:[#allocation2 + $0x130] sm:$0xff]
    %v481 = vld [vmem:[#allocation2 + $0x138] sm:$0xff]
    %v482 = vld [vmem:[#allocation2 + $0x140] sm:$0xff]
    %v483 = vld [vmem:[#allocation2 + $0x148] sm:$0xff]
    %v484 = vld [vmem:[#allocation2 + $0x150] sm:$0xff]
    %v485 = vld [vmem:[#allocation2 + $0x158] sm:$0xff]
    %v486 = vld [vmem:[#allocation2 + $0x160] sm:$0xff]
    %v487 = vld [vmem:[#allocation2 + $0x168] sm:$0xff]
    %v488 = vld [vmem:[#allocation2 + $0x170] sm:$0xff]
    %v489 = vld [vmem:[#allocation2 + $0x178] sm:$0xff]
    %v490 = vld [vmem:[#allocation2 + $0x180] sm:$0xff]
    %v491 = vld [vmem:[#allocation2 + $0x188] sm:$0xff]
    %v492 = vld [vmem:[#allocation2 + $0x190] sm:$0xff]
    %v493 = vld [vmem:[#allocation2 + $0x198] sm:$0xff]
    %v494 = vld [vmem:[#allocation2 + $0x1a0] sm:$0xff]
    %v495 = vld [vmem:[#allocation2 + $0x1a8] sm:$0xff]
    %v496 = vld [vmem:[#allocation2 + $0x1b0] sm:$0xff]
    %v497 = vld [vmem:[#allocation2 + $0x1b8] sm:$0xff]
    %v498 = vld [vmem:[#allocation2 + $0x1c0] sm:$0xff]
    %v499 = vld [vmem:[#allocation2 + $0x1c8] sm:$0xff]
    %v500 = vld [vmem:[#allocation2 + $0x1d0] sm:$0xff]
    %v501 = vld [vmem:[#allocation2 + $0x1d8] sm:$0xff]
    %v502 = vld [vmem:[#allocation2 + $0x1e0] sm:$0xff]
    %v503 = vld [vmem:[#allocation2 + $0x1e8] sm:$0xff]
    %v504 = vld [vmem:[#allocation2 + $0x1f0] sm:$0xff]
    %v505 = vld [vmem:[#allocation2 + $0x1f8] sm:$0xff]
    %v506 = vld [vmem:[%s7] sm:$0x3]
    %v508 = vperm.slane %v506, 0
    %v509 = vperm.slane %v506, 1
    %512 = vmatpush.msra.mxu0 %v472
    %513 = vmatpush.msra.mxu0 %v470
    %514 = vmatpush.msra.mxu0 %v468
    %515 = vmatpush.msra.mxu0 %v466
    %516 = vmatpush.msra.mxu0 %v464
    %517 = vmatpush.msra.mxu0 %v462
    %518 = vmatpush.msra.mxu0 %v460
    %519 = vmatpush.msra.mxu0 %v458
    %520 = vmatpush.msra.mxu0 %v456
    %521 = vmatpush.msra.mxu0 %v454
    %522 = vmatpush.msra.mxu0 %v452
    %523 = vmatpush.msra.mxu0 %v450
    %524 = vmatpush.msra.mxu0 %v448
    %525 = vmatpush.msra.mxu0 %v446
    %526 = vmatpush.msra.mxu0 %v444
    %527 = vmatpush.msra.mxu0 %v442
    %528 = vmatmul.f32.gmra.mxu0 %v440
    %v529 = vpop.f32.mrf.mxu0
    %v530 = vadd.f32 %v508, %v529
    %531 = vdwg.mxu0
    %532 = vmatpush.msra.mxu0 %v504
    %533 = vmatpush.msra.mxu0 %v502
    %534 = vmatpush.msra.mxu0 %v500
    %535 = vmatpush.msra.mxu0 %v498
    %536 = vmatpush.msra.mxu0 %v496
    %537 = vmatpush.msra.mxu0 %v494
    %538 = vmatpush.msra.mxu0 %v492
    %539 = vmatpush.msra.mxu0 %v490
    %540 = vmatpush.msra.mxu0 %v488
    %541 = vmatpush.msra.mxu0 %v486
    %542 = vmatpush.msra.mxu0 %v484
    %543 = vmatpush.msra.mxu0 %v482
    %544 = vmatpush.msra.mxu0 %v480
    %545 = vmatpush.msra.mxu0 %v478
    %546 = vmatpush.msra.mxu0 %v476
    %547 = vmatpush.msra.mxu0 %v474
    %548 = vmatmul.f32.gmra.mxu0 %v441
    %v549 = vpop.f32.mrf.mxu0
    %v550 = vadd.f32 %v530, %v549
    %551 = vdwg.mxu0
    %552 = vmatpush.msra.mxu0 %v473
    %553 = vmatpush.msra.mxu0 %v471
    %554 = vmatpush.msra.mxu0 %v469
    %555 = vmatpush.msra.mxu0 %v467
    %556 = vmatpush.msra.mxu0 %v465
    %557 = vmatpush.msra.mxu0 %v463
    %558 = vmatpush.msra.mxu0 %v461
    %559 = vmatpush.msra.mxu0 %v459
    %560 = vmatpush.msra.mxu0 %v457
    %561 = vmatpush.msra.mxu0 %v455
    %562 = vmatpush.msra.mxu0 %v453
    %563 = vmatpush.msra.mxu0 %v451
    %564 = vmatpush.msra.mxu0 %v449
    %565 = vmatpush.msra.mxu0 %v447
    %566 = vmatpush.msra.mxu0 %v445
    %567 = vmatpush.msra.mxu0 %v443
    %568 = vmatmul.f32.gmra.mxu0 %v440
    %v569 = vpop.f32.mrf.mxu0
    %v570 = vadd.f32 %v509, %v569
    %571 = vdwg.mxu0
    %572 = vmatpush.msra.mxu0 %v505
    %573 = vmatpush.msra.mxu0 %v503
    %574 = vmatpush.msra.mxu0 %v501
    %575 = vmatpush.msra.mxu0 %v499
    %576 = vmatpush.msra.mxu0 %v497
    %577 = vmatpush.msra.mxu0 %v495
    %578 = vmatpush.msra.mxu0 %v493
    %579 = vmatpush.msra.mxu0 %v491
    %580 = vmatpush.msra.mxu0 %v489
    %581 = vmatpush.msra.mxu0 %v487
    %582 = vmatpush.msra.mxu0 %v485
    %583 = vmatpush.msra.mxu0 %v483
    %584 = vmatpush.msra.mxu0 %v481
    %585 = vmatpush.msra.mxu0 %v479
    %586 = vmatpush.msra.mxu0 %v477
    %587 = vmatpush.msra.mxu0 %v475
    %588 = vmatmul.f32.gmra.mxu0 %v441
    %v589 = vpop.f32.mrf.mxu0
    %v590 = vadd.f32 %v570, %v589
    %591 = vdwg.mxu0
    %v592 = vxor.u32 %v550, 2147483648
    %v593 = vxor.u32 %v590, 2147483648
    %v594 = vmul.f32 %v592, 1.442695
    %v595 = vpow.pop %v594
    %v596 = vmul.f32 %v593, 1.442695
    %v597 = vpow.pop %v596
    %v598 = vadd.f32 %v595, 1.0
    %v599 = vadd.f32 %v597, 1.0
    %v600 = vrcp.pop %v598
    %v601 = vmul.f32 %v598, %v600
    %v602 = vsub.f32 1.0, %v601
    %v603 = vmul.f32 %v600, %v602
    %v604 = vadd.f32 %v600, %v603
    %vm605 = vweird.f32 %v598
    %vm606 = vweird.f32 %v600
    %vm607 = vmor %vm605, %vm606
    %v608 = vsel %vm607, %v600, %v604
    %v609 = vand.u32 2147483647, %v598
    %vm610 = vcmp.eq.f32.partialorder %v609, 8.507059e+37
    %v611 = vand.u32 %v598, 2147483648
    %v612 = vor.u32 1.1754944e-38, %v611
    %v613 = vsel %vm610, %v612, %v608
    %v614 = vmul.f32 1.0, %v613
    %v615 = vrcp.pop %v599
    %v616 = vmul.f32 %v599, %v615
    %v617 = vsub.f32 1.0, %v616
    %v618 = vmul.f32 %v615, %v617
    %v619 = vadd.f32 %v615, %v618
    %vm620 = vweird.f32 %v599
    %vm621 = vweird.f32 %v615
    %vm622 = vmor %vm620, %vm621
    %v623 = vsel %vm622, %v615, %v619
    %v624 = vand.u32 2147483647, %v599
    %vm625 = vcmp.eq.f32.partialorder %v624, 8.507059e+37
    %v626 = vand.u32 %v599, 2147483648
    %v627 = vor.u32 1.1754944e-38, %v626
    %v628 = vsel %vm625, %v627, %v623
    %v629 = vmul.f32 1.0, %v628
    %v630 = vmul.f32 %v550, %v614
    %v631 = vmul.f32 %v590, %v629
    %v632 = vld [vmem:[#allocation4] sm:$0xff]
    %v633 = vld [vmem:[#allocation4 + $0x8] sm:$0xff]
    %v634 = vld [vmem:[#allocation4 + $0x10] sm:$0xff]
    %v635 = vld [vmem:[#allocation4 + $0x18] sm:$0xff]
    %v636 = vld [vmem:[#allocation4 + $0x20] sm:$0xff]
    %v637 = vld [vmem:[#allocation4 + $0x28] sm:$0xff]
    %v638 = vld [vmem:[#allocation4 + $0x30] sm:$0xff]
    %v639 = vld [vmem:[#allocation4 + $0x38] sm:$0xff]
    %v640 = vld [vmem:[#allocation4 + $0x40] sm:$0xff]
    %v641 = vld [vmem:[#allocation4 + $0x48] sm:$0xff]
    %v642 = vld [vmem:[#allocation4 + $0x50] sm:$0xff]
    %v643 = vld [vmem:[#allocation4 + $0x58] sm:$0xff]
    %v644 = vld [vmem:[#allocation4 + $0x60] sm:$0xff]
    %v645 = vld [vmem:[#allocation4 + $0x68] sm:$0xff]
    %v646 = vld [vmem:[#allocation4 + $0x70] sm:$0xff]
    %v647 = vld [vmem:[#allocation4 + $0x78] sm:$0xff]
    %v648 = vld [vmem:[#allocation4 + $0x80] sm:$0xff]
    %v649 = vld [vmem:[#allocation4 + $0x88] sm:$0xff]
    %v650 = vld [vmem:[#allocation4 + $0x90] sm:$0xff]
    %v651 = vld [vmem:[#allocation4 + $0x98] sm:$0xff]
    %v652 = vld [vmem:[#allocation4 + $0xa0] sm:$0xff]
    %v653 = vld [vmem:[#allocation4 + $0xa8] sm:$0xff]
    %v654 = vld [vmem:[#allocation4 + $0xb0] sm:$0xff]
    %v655 = vld [vmem:[#allocation4 + $0xb8] sm:$0xff]
    %v656 = vld [vmem:[#allocation4 + $0xc0] sm:$0xff]
    %v657 = vld [vmem:[#allocation4 + $0xc8] sm:$0xff]
    %v658 = vld [vmem:[#allocation4 + $0xd0] sm:$0xff]
    %v659 = vld [vmem:[#allocation4 + $0xd8] sm:$0xff]
    %v660 = vld [vmem:[#allocation4 + $0xe0] sm:$0xff]
    %v661 = vld [vmem:[#allocation4 + $0xe8] sm:$0xff]
    %v662 = vld [vmem:[#allocation4 + $0xf0] sm:$0xff]
    %v663 = vld [vmem:[#allocation4 + $0xf8] sm:$0xff]
    %v664 = vld [vmem:[#allocation4 + $0x100] sm:$0xff]
    %v665 = vld [vmem:[#allocation4 + $0x108] sm:$0xff]
    %v666 = vld [vmem:[#allocation4 + $0x110] sm:$0xff]
    %v667 = vld [vmem:[#allocation4 + $0x118] sm:$0xff]
    %v668 = vld [vmem:[#allocation4 + $0x120] sm:$0xff]
    %v669 = vld [vmem:[#allocation4 + $0x128] sm:$0xff]
    %v670 = vld [vmem:[#allocation4 + $0x130] sm:$0xff]
    %v671 = vld [vmem:[#allocation4 + $0x138] sm:$0xff]
    %v672 = vld [vmem:[#allocation4 + $0x140] sm:$0xff]
    %v673 = vld [vmem:[#allocation4 + $0x148] sm:$0xff]
    %v674 = vld [vmem:[#allocation4 + $0x150] sm:$0xff]
    %v675 = vld [vmem:[#allocation4 + $0x158] sm:$0xff]
    %v676 = vld [vmem:[#allocation4 + $0x160] sm:$0xff]
    %v677 = vld [vmem:[#allocation4 + $0x168] sm:$0xff]
    %v678 = vld [vmem:[#allocation4 + $0x170] sm:$0xff]
    %v679 = vld [vmem:[#allocation4 + $0x178] sm:$0xff]
    %v680 = vld [vmem:[#allocation4 + $0x180] sm:$0xff]
    %v681 = vld [vmem:[#allocation4 + $0x188] sm:$0xff]
    %v682 = vld [vmem:[#allocation4 + $0x190] sm:$0xff]
    %v683 = vld [vmem:[#allocation4 + $0x198] sm:$0xff]
    %v684 = vld [vmem:[#allocation4 + $0x1a0] sm:$0xff]
    %v685 = vld [vmem:[#allocation4 + $0x1a8] sm:$0xff]
    %v686 = vld [vmem:[#allocation4 + $0x1b0] sm:$0xff]
    %v687 = vld [vmem:[#allocation4 + $0x1b8] sm:$0xff]
    %v688 = vld [vmem:[#allocation4 + $0x1c0] sm:$0xff]
    %v689 = vld [vmem:[#allocation4 + $0x1c8] sm:$0xff]
    %v690 = vld [vmem:[#allocation4 + $0x1d0] sm:$0xff]
    %v691 = vld [vmem:[#allocation4 + $0x1d8] sm:$0xff]
    %v692 = vld [vmem:[#allocation4 + $0x1e0] sm:$0xff]
    %v693 = vld [vmem:[#allocation4 + $0x1e8] sm:$0xff]
    %v694 = vld [vmem:[#allocation4 + $0x1f0] sm:$0xff]
    %v695 = vld [vmem:[#allocation4 + $0x1f8] sm:$0xff]
    %v696 = vld [vmem:[%s9] sm:$0x3]
    %v698 = vperm.slane %v696, 0
    %v699 = vperm.slane %v696, 1
    %702 = vmatpush.msra.mxu0 %v662
    %703 = vmatpush.msra.mxu0 %v660
    %704 = vmatpush.msra.mxu0 %v658
    %705 = vmatpush.msra.mxu0 %v656
    %706 = vmatpush.msra.mxu0 %v654
    %707 = vmatpush.msra.mxu0 %v652
    %708 = vmatpush.msra.mxu0 %v650
    %709 = vmatpush.msra.mxu0 %v648
    %710 = vmatpush.msra.mxu0 %v646
    %711 = vmatpush.msra.mxu0 %v644
    %712 = vmatpush.msra.mxu0 %v642
    %713 = vmatpush.msra.mxu0 %v640
    %714 = vmatpush.msra.mxu0 %v638
    %715 = vmatpush.msra.mxu0 %v636
    %716 = vmatpush.msra.mxu0 %v634
    %717 = vmatpush.msra.mxu0 %v632
    %718 = vmatmul.f32.gmra.mxu0 %v630
    %v719 = vpop.f32.mrf.mxu0
    %v720 = vadd.f32 %v698, %v719
    %721 = vdwg.mxu0
    %722 = vmatpush.msra.mxu0 %v694
    %723 = vmatpush.msra.mxu0 %v692
    %724 = vmatpush.msra.mxu0 %v690
    %725 = vmatpush.msra.mxu0 %v688
    %726 = vmatpush.msra.mxu0 %v686
    %727 = vmatpush.msra.mxu0 %v684
    %728 = vmatpush.msra.mxu0 %v682
    %729 = vmatpush.msra.mxu0 %v680
    %730 = vmatpush.msra.mxu0 %v678
    %731 = vmatpush.msra.mxu0 %v676
    %732 = vmatpush.msra.mxu0 %v674
    %733 = vmatpush.msra.mxu0 %v672
    %734 = vmatpush.msra.mxu0 %v670
    %735 = vmatpush.msra.mxu0 %v668
    %736 = vmatpush.msra.mxu0 %v666
    %737 = vmatpush.msra.mxu0 %v664
    %738 = vmatmul.f32.gmra.mxu0 %v631
    %v739 = vpop.f32.mrf.mxu0
    %v740 = vadd.f32 %v720, %v739
    %741 = vdwg.mxu0
    %742 = vmatpush.msra.mxu0 %v663
    %743 = vmatpush.msra.mxu0 %v661
    %744 = vmatpush.msra.mxu0 %v659
    %745 = vmatpush.msra.mxu0 %v657
    %746 = vmatpush.msra.mxu0 %v655
    %747 = vmatpush.msra.mxu0 %v653
    %748 = vmatpush.msra.mxu0 %v651
    %749 = vmatpush.msra.mxu0 %v649
    %750 = vmatpush.msra.mxu0 %v647
    %751 = vmatpush.msra.mxu0 %v645
    %752 = vmatpush.msra.mxu0 %v643
    %753 = vmatpush.msra.mxu0 %v641
    %754 = vmatpush.msra.mxu0 %v639
    %755 = vmatpush.msra.mxu0 %v637
    %756 = vmatpush.msra.mxu0 %v635
    %757 = vmatpush.msra.mxu0 %v633
    %758 = vmatmul.f32.gmra.mxu0 %v630
    %v759 = vpop.f32.mrf.mxu0
    %v760 = vadd.f32 %v699, %v759
    %761 = vdwg.mxu0
    %762 = vmatpush.msra.mxu0 %v695
    %763 = vmatpush.msra.mxu0 %v693
    %764 = vmatpush.msra.mxu0 %v691
    %765 = vmatpush.msra.mxu0 %v689
    %766 = vmatpush.msra.mxu0 %v687
    %767 = vmatpush.msra.mxu0 %v685
    %768 = vmatpush.msra.mxu0 %v683
    %769 = vmatpush.msra.mxu0 %v681
    %770 = vmatpush.msra.mxu0 %v679
    %771 = vmatpush.msra.mxu0 %v677
    %772 = vmatpush.msra.mxu0 %v675
    %773 = vmatpush.msra.mxu0 %v673
    %774 = vmatpush.msra.mxu0 %v671
    %775 = vmatpush.msra.mxu0 %v669
    %776 = vmatpush.msra.mxu0 %v667
    %777 = vmatpush.msra.mxu0 %v665
    %778 = vmatmul.f32.gmra.mxu0 %v631
    %v779 = vpop.f32.mrf.mxu0
    %v780 = vadd.f32 %v760, %v779
    %781 = vdwg.mxu0
    %v782 = vxor.u32 %v740, 2147483648
    %v783 = vxor.u32 %v780, 2147483648
    %v784 = vmul.f32 %v782, 1.442695
    %v785 = vpow.pop %v784
    %v786 = vmul.f32 %v783, 1.442695
    %v787 = vpow.pop %v786
    %v788 = vadd.f32 %v785, 1.0
    %v789 = vadd.f32 %v787, 1.0
    %v790 = vrcp.pop %v788
    %v791 = vmul.f32 %v788, %v790
    %v792 = vsub.f32 1.0, %v791
    %v793 = vmul.f32 %v790, %v792
    %v794 = vadd.f32 %v790, %v793
    %vm795 = vweird.f32 %v788
    %vm796 = vweird.f32 %v790
    %vm797 = vmor %vm795, %vm796
    %v798 = vsel %vm797, %v790, %v794
    %v799 = vand.u32 2147483647, %v788
    %vm800 = vcmp.eq.f32.partialorder %v799, 8.507059e+37
    %v801 = vand.u32 %v788, 2147483648
    %v802 = vor.u32 1.1754944e-38, %v801
    %v803 = vsel %vm800, %v802, %v798
    %v804 = vmul.f32 1.0, %v803
    %v805 = vrcp.pop %v789
    %v806 = vmul.f32 %v789, %v805
    %v807 = vsub.f32 1.0, %v806
    %v808 = vmul.f32 %v805, %v807
    %v809 = vadd.f32 %v805, %v808
    %vm810 = vweird.f32 %v789
    %vm811 = vweird.f32 %v805
    %vm812 = vmor %vm810, %vm811
    %v813 = vsel %vm812, %v805, %v809
    %v814 = vand.u32 2147483647, %v789
    %vm815 = vcmp.eq.f32.partialorder %v814, 8.507059e+37
    %v816 = vand.u32 %v789, 2147483648
    %v817 = vor.u32 1.1754944e-38, %v816
    %v818 = vsel %vm815, %v817, %v813
    %v819 = vmul.f32 1.0, %v818
    %v820 = vmul.f32 %v740, %v804
    %v821 = vmul.f32 %v780, %v819
    %v822 = vld [vmem:[#allocation6] sm:$0xff]
    %v823 = vld [vmem:[#allocation6 + $0x8] sm:$0xff]
    %v824 = vld [vmem:[#allocation6 + $0x10] sm:$0xff]
    %v825 = vld [vmem:[#allocation6 + $0x18] sm:$0xff]
    %v826 = vld [vmem:[#allocation6 + $0x20] sm:$0xff]
    %v827 = vld [vmem:[#allocation6 + $0x28] sm:$0xff]
    %v828 = vld [vmem:[#allocation6 + $0x30] sm:$0xff]
    %v829 = vld [vmem:[#allocation6 + $0x38] sm:$0xff]
    %v830 = vld [vmem:[#allocation6 + $0x40] sm:$0xff]
    %v831 = vld [vmem:[#allocation6 + $0x48] sm:$0xff]
    %v832 = vld [vmem:[#allocation6 + $0x50] sm:$0xff]
    %v833 = vld [vmem:[#allocation6 + $0x58] sm:$0xff]
    %v834 = vld [vmem:[#allocation6 + $0x60] sm:$0xff]
    %v835 = vld [vmem:[#allocation6 + $0x68] sm:$0xff]
    %v836 = vld [vmem:[#allocation6 + $0x70] sm:$0xff]
    %v837 = vld [vmem:[#allocation6 + $0x78] sm:$0xff]
    %v838 = vld [vmem:[#allocation6 + $0x80] sm:$0xff]
    %v839 = vld [vmem:[#allocation6 + $0x88] sm:$0xff]
    %v840 = vld [vmem:[#allocation6 + $0x90] sm:$0xff]
    %v841 = vld [vmem:[#allocation6 + $0x98] sm:$0xff]
    %v842 = vld [vmem:[#allocation6 + $0xa0] sm:$0xff]
    %v843 = vld [vmem:[#allocation6 + $0xa8] sm:$0xff]
    %v844 = vld [vmem:[#allocation6 + $0xb0] sm:$0xff]
    %v845 = vld [vmem:[#allocation6 + $0xb8] sm:$0xff]
    %v846 = vld [vmem:[#allocation6 + $0xc0] sm:$0xff]
    %v847 = vld [vmem:[#allocation6 + $0xc8] sm:$0xff]
    %v848 = vld [vmem:[#allocation6 + $0xd0] sm:$0xff]
    %v849 = vld [vmem:[#allocation6 + $0xd8] sm:$0xff]
    %v850 = vld [vmem:[#allocation6 + $0xe0] sm:$0xff]
    %v851 = vld [vmem:[#allocation6 + $0xe8] sm:$0xff]
    %v852 = vld [vmem:[#allocation6 + $0xf0] sm:$0xff]
    %v853 = vld [vmem:[#allocation6 + $0xf8] sm:$0xff]
    %v854 = vld [vmem:[#allocation6 + $0x100] sm:$0xff]
    %v855 = vld [vmem:[#allocation6 + $0x108] sm:$0xff]
    %v856 = vld [vmem:[#allocation6 + $0x110] sm:$0xff]
    %v857 = vld [vmem:[#allocation6 + $0x118] sm:$0xff]
    %v858 = vld [vmem:[#allocation6 + $0x120] sm:$0xff]
    %v859 = vld [vmem:[#allocation6 + $0x128] sm:$0xff]
    %v860 = vld [vmem:[#allocation6 + $0x130] sm:$0xff]
    %v861 = vld [vmem:[#allocation6 + $0x138] sm:$0xff]
    %v862 = vld [vmem:[#allocation6 + $0x140] sm:$0xff]
    %v863 = vld [vmem:[#allocation6 + $0x148] sm:$0xff]
    %v864 = vld [vmem:[#allocation6 + $0x150] sm:$0xff]
    %v865 = vld [vmem:[#allocation6 + $0x158] sm:$0xff]
    %v866 = vld [vmem:[#allocation6 + $0x160] sm:$0xff]
    %v867 = vld [vmem:[#allocation6 + $0x168] sm:$0xff]
    %v868 = vld [vmem:[#allocation6 + $0x170] sm:$0xff]
    %v869 = vld [vmem:[#allocation6 + $0x178] sm:$0xff]
    %v870 = vld [vmem:[#allocation6 + $0x180] sm:$0xff]
    %v871 = vld [vmem:[#allocation6 + $0x188] sm:$0xff]
    %v872 = vld [vmem:[#allocation6 + $0x190] sm:$0xff]
    %v873 = vld [vmem:[#allocation6 + $0x198] sm:$0xff]
    %v874 = vld [vmem:[#allocation6 + $0x1a0] sm:$0xff]
    %v875 = vld [vmem:[#allocation6 + $0x1a8] sm:$0xff]
    %v876 = vld [vmem:[#allocation6 + $0x1b0] sm:$0xff]
    %v877 = vld [vmem:[#allocation6 + $0x1b8] sm:$0xff]
    %v878 = vld [vmem:[#allocation6 + $0x1c0] sm:$0xff]
    %v879 = vld [vmem:[#allocation6 + $0x1c8] sm:$0xff]
    %v880 = vld [vmem:[#allocation6 + $0x1d0] sm:$0xff]
    %v881 = vld [vmem:[#allocation6 + $0x1d8] sm:$0xff]
    %v882 = vld [vmem:[#allocation6 + $0x1e0] sm:$0xff]
    %v883 = vld [vmem:[#allocation6 + $0x1e8] sm:$0xff]
    %v884 = vld [vmem:[#allocation6 + $0x1f0] sm:$0xff]
    %v885 = vld [vmem:[#allocation6 + $0x1f8] sm:$0xff]
    %v886 = vld [vmem:[%s11] sm:$0x3]
    %v888 = vperm.slane %v886, 0
    %v889 = vperm.slane %v886, 1
    %892 = vmatpush.msra.mxu0 %v852
    %893 = vmatpush.msra.mxu0 %v850
    %894 = vmatpush.msra.mxu0 %v848
    %895 = vmatpush.msra.mxu0 %v846
    %896 = vmatpush.msra.mxu0 %v844
    %897 = vmatpush.msra.mxu0 %v842
    %898 = vmatpush.msra.mxu0 %v840
    %899 = vmatpush.msra.mxu0 %v838
    %900 = vmatpush.msra.mxu0 %v836
    %901 = vmatpush.msra.mxu0 %v834
    %902 = vmatpush.msra.mxu0 %v832
    %903 = vmatpush.msra.mxu0 %v830
    %904 = vmatpush.msra.mxu0 %v828
    %905 = vmatpush.msra.mxu0 %v826
    %906 = vmatpush.msra.mxu0 %v824
    %907 = vmatpush.msra.mxu0 %v822
    %908 = vmatmul.f32.gmra.mxu0 %v820
    %v909 = vpop.f32.mrf.mxu0
    %v910 = vadd.f32 %v888, %v909
    %911 = vdwg.mxu0
    %912 = vmatpush.msra.mxu0 %v884
    %913 = vmatpush.msra.mxu0 %v882
    %914 = vmatpush.msra.mxu0 %v880
    %915 = vmatpush.msra.mxu0 %v878
    %916 = vmatpush.msra.mxu0 %v876
    %917 = vmatpush.msra.mxu0 %v874
    %918 = vmatpush.msra.mxu0 %v872
    %919 = vmatpush.msra.mxu0 %v870
    %920 = vmatpush.msra.mxu0 %v868
    %921 = vmatpush.msra.mxu0 %v866
    %922 = vmatpush.msra.mxu0 %v864
    %923 = vmatpush.msra.mxu0 %v862
    %924 = vmatpush.msra.mxu0 %v860
    %925 = vmatpush.msra.mxu0 %v858
    %926 = vmatpush.msra.mxu0 %v856
    %927 = vmatpush.msra.mxu0 %v854
    %928 = vmatmul.f32.gmra.mxu0 %v821
    %v929 = vpop.f32.mrf.mxu0
    %v930 = vadd.f32 %v910, %v929
    %931 = vdwg.mxu0
    %932 = vmatpush.msra.mxu0 %v853
    %933 = vmatpush.msra.mxu0 %v851
    %934 = vmatpush.msra.mxu0 %v849
    %935 = vmatpush.msra.mxu0 %v847
    %936 = vmatpush.msra.mxu0 %v845
    %937 = vmatpush.msra.mxu0 %v843
    %938 = vmatpush.msra.mxu0 %v841
    %939 = vmatpush.msra.mxu0 %v839
    %940 = vmatpush.msra.mxu0 %v837
    %941 = vmatpush.msra.mxu0 %v835
    %942 = vmatpush.msra.mxu0 %v833
    %943 = vmatpush.msra.mxu0 %v831
    %944 = vmatpush.msra.mxu0 %v829
    %945 = vmatpush.msra.mxu0 %v827
    %946 = vmatpush.msra.mxu0 %v825
    %947 = vmatpush.msra.mxu0 %v823
    %948 = vmatmul.f32.gmra.mxu0 %v820
    %v949 = vpop.f32.mrf.mxu0
    %v950 = vadd.f32 %v889, %v949
    %951 = vdwg.mxu0
    %952 = vmatpush.msra.mxu0 %v885
    %953 = vmatpush.msra.mxu0 %v883
    %954 = vmatpush.msra.mxu0 %v881
    %955 = vmatpush.msra.mxu0 %v879
    %956 = vmatpush.msra.mxu0 %v877
    %957 = vmatpush.msra.mxu0 %v875
    %958 = vmatpush.msra.mxu0 %v873
    %959 = vmatpush.msra.mxu0 %v871
    %960 = vmatpush.msra.mxu0 %v869
    %961 = vmatpush.msra.mxu0 %v867
    %962 = vmatpush.msra.mxu0 %v865
    %963 = vmatpush.msra.mxu0 %v863
    %964 = vmatpush.msra.mxu0 %v861
    %965 = vmatpush.msra.mxu0 %v859
    %966 = vmatpush.msra.mxu0 %v857
    %967 = vmatpush.msra.mxu0 %v855
    %968 = vmatmul.f32.gmra.mxu0 %v821
    %v969 = vpop.f32.mrf.mxu0
    %v970 = vadd.f32 %v950, %v969
    %971 = vdwg.mxu0
    %v972 = vxor.u32 %v930, 2147483648
    %v973 = vxor.u32 %v970, 2147483648
    %v974 = vmul.f32 %v972, 1.442695
    %v975 = vpow.pop %v974
    %v976 = vmul.f32 %v973, 1.442695
    %v977 = vpow.pop %v976
    %v978 = vadd.f32 %v975, 1.0
    %v979 = vadd.f32 %v977, 1.0
    %v980 = vrcp.pop %v978
    %v981 = vmul.f32 %v978, %v980
    %v982 = vsub.f32 1.0, %v981
    %v983 = vmul.f32 %v980, %v982
    %v984 = vadd.f32 %v980, %v983
    %vm985 = vweird.f32 %v978
    %vm986 = vweird.f32 %v980
    %vm987 = vmor %vm985, %vm986
    %v988 = vsel %vm987, %v980, %v984
    %v989 = vand.u32 2147483647, %v978
    %vm990 = vcmp.eq.f32.partialorder %v989, 8.507059e+37
    %v991 = vand.u32 %v978, 2147483648
    %v992 = vor.u32 1.1754944e-38, %v991
    %v993 = vsel %vm990, %v992, %v988
    %v994 = vmul.f32 1.0, %v993
    %v995 = vrcp.pop %v979
    %v996 = vmul.f32 %v979, %v995
    %v997 = vsub.f32 1.0, %v996
    %v998 = vmul.f32 %v995, %v997
    %v999 = vadd.f32 %v995, %v998
    %vm1000 = vweird.f32 %v979
    %vm1001 = vweird.f32 %v995
    %vm1002 = vmor %vm1000, %vm1001
    %v1003 = vsel %vm1002, %v995, %v999
    %v1004 = vand.u32 2147483647, %v979
    %vm1005 = vcmp.eq.f32.partialorder %v1004, 8.507059e+37
    %v1006 = vand.u32 %v979, 2147483648
    %v1007 = vor.u32 1.1754944e-38, %v1006
    %v1008 = vsel %vm1005, %v1007, %v1003
    %v1009 = vmul.f32 1.0, %v1008
    %v1010 = vmul.f32 %v930, %v994
    %v1011 = vmul.f32 %v970, %v1009
    %v1012 = vld [vmem:[%s12] sm:$0xff]
    %v1013 = vld [vmem:[%s12 + $0x8] sm:$0xff]
    %v1014 = vld [vmem:[%s12 + $0x10] sm:$0xff]
    %v1015 = vld [vmem:[%s12 + $0x18] sm:$0xff]
    %v1016 = vld [vmem:[%s12 + $0x20] sm:$0xff]
    %v1017 = vld [vmem:[%s12 + $0x28] sm:$0xff]
    %v1018 = vld [vmem:[%s12 + $0x30] sm:$0xff]
    %v1019 = vld [vmem:[%s12 + $0x38] sm:$0xff]
    %v1020 = vld [vmem:[%s12 + $0x40] sm:$0xff]
    %v1021 = vld [vmem:[%s12 + $0x48] sm:$0xff]
    %v1022 = vld [vmem:[%s12 + $0x50] sm:$0xff]
    %v1023 = vld [vmem:[%s12 + $0x58] sm:$0xff]
    %v1024 = vld [vmem:[%s12 + $0x60] sm:$0xff]
    %v1025 = vld [vmem:[%s12 + $0x68] sm:$0xff]
    %v1026 = vld [vmem:[%s12 + $0x70] sm:$0xff]
    %v1027 = vld [vmem:[%s12 + $0x78] sm:$0xff]
    %v1028 = vld [vmem:[%s12 + $0x80] sm:$0xff]
    %v1029 = vld [vmem:[%s12 + $0x88] sm:$0xff]
    %v1030 = vld [vmem:[%s12 + $0x90] sm:$0xff]
    %v1031 = vld [vmem:[%s12 + $0x98] sm:$0xff]
    %v1032 = vld [vmem:[%s12 + $0xa0] sm:$0xff]
    %v1033 = vld [vmem:[%s12 + $0xa8] sm:$0xff]
    %v1034 = vld [vmem:[%s12 + $0xb0] sm:$0xff]
    %v1035 = vld [vmem:[%s12 + $0xb8] sm:$0xff]
    %v1036 = vld [vmem:[%s12 + $0xc0] sm:$0xff]
    %v1037 = vld [vmem:[%s12 + $0xc8] sm:$0xff]
    %v1038 = vld [vmem:[%s12 + $0xd0] sm:$0xff]
    %v1039 = vld [vmem:[%s12 + $0xd8] sm:$0xff]
    %v1040 = vld [vmem:[%s12 + $0xe0] sm:$0xff]
    %v1041 = vld [vmem:[%s12 + $0xe8] sm:$0xff]
    %v1042 = vld [vmem:[%s12 + $0xf0] sm:$0xff]
    %v1043 = vld [vmem:[%s12 + $0xf8] sm:$0xff]
    %v1044 = vld [vmem:[%s13] sm:$0x1]
    %v1046 = vperm.slane %v1044, 0
    %1048 = vmatpush.msra.mxu0 %v1027
    %1049 = vmatpush.msra.mxu0 %v1026
    %1050 = vmatpush.msra.mxu0 %v1025
    %1051 = vmatpush.msra.mxu0 %v1024
    %1052 = vmatpush.msra.mxu0 %v1023
    %1053 = vmatpush.msra.mxu0 %v1022
    %1054 = vmatpush.msra.mxu0 %v1021
    %1055 = vmatpush.msra.mxu0 %v1020
    %1056 = vmatpush.msra.mxu0 %v1019
    %1057 = vmatpush.msra.mxu0 %v1018
    %1058 = vmatpush.msra.mxu0 %v1017
    %1059 = vmatpush.msra.mxu0 %v1016
    %1060 = vmatpush.msra.mxu0 %v1015
    %1061 = vmatpush.msra.mxu0 %v1014
    %1062 = vmatpush.msra.mxu0 %v1013
    %1063 = vmatpush.msra.mxu0 %v1012
    %1064 = vmatmul.f32.gmra.mxu0 %v1010
    %v1065 = vpop.f32.mrf.mxu0
    %v1066 = vadd.f32 %v1046, %v1065
    %1067 = vdwg.mxu0
    %1068 = vmatpush.msra.mxu0 %v1043
    %1069 = vmatpush.msra.mxu0 %v1042
    %1070 = vmatpush.msra.mxu0 %v1041
    %1071 = vmatpush.msra.mxu0 %v1040
    %1072 = vmatpush.msra.mxu0 %v1039
    %1073 = vmatpush.msra.mxu0 %v1038
    %1074 = vmatpush.msra.mxu0 %v1037
    %1075 = vmatpush.msra.mxu0 %v1036
    %1076 = vmatpush.msra.mxu0 %v1035
    %1077 = vmatpush.msra.mxu0 %v1034
    %1078 = vmatpush.msra.mxu0 %v1033
    %1079 = vmatpush.msra.mxu0 %v1032
    %1080 = vmatpush.msra.mxu0 %v1031
    %1081 = vmatpush.msra.mxu0 %v1030
    %1082 = vmatpush.msra.mxu0 %v1029
    %1083 = vmatpush.msra.mxu0 %v1028
    %1084 = vmatmul.f32.gmra.mxu0 %v1011
    %v1085 = vpop.f32.mrf.mxu0
    %v1086 = vadd.f32 %v1066, %v1085
    %1087 = vdwg.mxu0
    %vm1088 = vcmask 23552
    %1089 = vst.msk [vmem:[%s14] sm:$0xff] %vm1088, %v1086
    // Predicated region
    $region70: #{tpu_custom_call.1} parent=1 // pred_check
      _
    $region71: #{tpu_custom_call.1} parent=1 // pred_check_branch
      %1091 = sbr.rel (0) target = $region73
    $region72: #{tpu_custom_call.1} parent=1 // pred_region
      _
    $region73: #{tpu_custom_call.1} parent=1 // pred_fallthru
      _
    // Predicated region
    $region74: #{tpu_custom_call.1} parent=1 // pred_check
      _
    $region75: #{tpu_custom_call.1} parent=1 // pred_check_branch
      %1093 = sbr.rel (0) target = $region77
    $region76: #{tpu_custom_call.1} parent=1 // pred_region
      _
    $region77: #{tpu_custom_call.1} parent=1 // pred_fallthru
      _
    %1094 = vsyncpa [#allocation3], 1
    %1095 = vsyncpa [#allocation5], 1

</llo_original>
